<compile_context>
chip_gen: v5e
topology: v5e:2x2
jax: 0.10.0
libtpu: 0.0.40
codegen_flags: <defaults>
</compile_context>

<pallas_src>
import functools
import math

import jax
import jax.numpy as jnp
from jax.experimental import pallas as pl
from jax.experimental.pallas import tpu as pltpu


def _conv_relu_kernel(x_ref, w_ref, b_ref, o_ref, *, th, wo, kh, kw):
    """One (batch, row-tile) output block per grid step.

    x_ref : (1, 1, TH+KH-1, W+KW-1, Cin)  padded input row-tile (+halo), VMEM
    w_ref : (KH*KW*Cin, Cout_pad)         im2col-packed weights, VMEM
    b_ref : (1, Cout_pad)                 zero-padded bias (f32), VMEM
    o_ref : (1, TH*W, Cout_pad)           lane-dense output tile, VMEM
    """
    cin = x_ref.shape[-1]

    # im2col patch: concatenate the KH*KW shifted windows along the channel
    # (lane) axis, then collapse (TH, W) -> TH*W rows (minor dim unchanged).
    taps = []
    for i in range(kh):
        for j in range(kw):
            taps.append(x_ref[0, 0, i:i + th, j:j + wo, :])
    patch = jnp.concatenate(taps, axis=-1)           # (TH, W, KH*KW*Cin)
    patch = patch.reshape(th * wo, kh * kw * cin)    # (TH*W, KH*KW*Cin)

    # Single MXU matmul with f32 accumulation (contraction = KH*KW*Cin).
    acc = jnp.dot(patch, w_ref[...], preferred_element_type=jnp.float32)

    # Lane-dense epilogue: bias + ReLU + store on full 128-lane vregs.
    y = jnp.maximum(acc + b_ref[...], 0.0)
    o_ref[0] = y.astype(o_ref.dtype)


def conv_block_forward_nhwc(x_nhwc, weight, bias, *, row_tile=8,
                            compute_dtype=jnp.float32):
    """ReLU(Conv2d) on NHWC activations. `weight` is PyTorch (Cout,Cin,KH,KW)."""
    N, H, W, Cin = x_nhwc.shape
    Cout, Cin_w, KH, KW = weight.shape
    assert Cin_w == Cin
    # 'same' output size only holds for odd kernels with this padding rule.
    assert KH % 2 == 1 and KW % 2 == 1, "odd kernel_size required"
    pad_h = (KH + 1) // 2 - 1
    pad_w = (KW + 1) // 2 - 1

    # Row tile: keeps the accumulator and input halo tile small. On v7x
    # (64 MiB VMEM) keep this ~half of what v5e/v6e would use.
    th = min(int(row_tile), H)
    nt = pl.cdiv(H, th)
    h_tiles = nt * th
    wp = W + 2 * pad_w
    cout_pad = -(-Cout // 128) * 128          # lane-dense output channels
    kkc = KH * KW * Cin
    out_dtype = x_nhwc.dtype

    # ---- wrapper-side packing (plain XLA ops, fused by the compiler) --------
    # Zero padding + overlapping row tiles (halo = KH-1 rows) so the kernel's
    # BlockSpecs stay plain Blocked indexing with automatic double-buffering.
    # TODO(synk): for very large images fold the pad/halo handling into the
    # kernel with a manual (pl.ANY + make_async_copy) halo DMA to avoid this
    # extra HBM copy of the activations.
    x_pad = jnp.pad(x_nhwc.astype(compute_dtype),
                    ((0, 0), (pad_h, pad_h + (h_tiles - H)),
                     (pad_w, pad_w), (0, 0)))
    x_tiles = jnp.stack(
        [x_pad[:, t * th:t * th + th + KH - 1] for t in range(nt)], axis=1)
    # x_tiles: (N, nt, TH+KH-1, Wp, Cin)

    # im2col-packed, lane-padded weights: one contiguous 2-D slab.
    w_packed = jnp.transpose(weight, (2, 3, 1, 0)).reshape(kkc, Cout)
    w_packed = jnp.pad(w_packed, ((0, 0), (0, cout_pad - Cout)))
    w_packed = w_packed.astype(compute_dtype)
    b_packed = jnp.pad(bias.astype(jnp.float32),
                       (0, cout_pad - Cout)).reshape(1, cout_pad)

    # ---- VMEM budget + cost hint --------------------------------------------
    def _rnd(v, m):
        return -(-v // m) * m

    isz = jnp.dtype(compute_dtype).itemsize
    osz = jnp.dtype(out_dtype).itemsize
    in_tile_b = (th + KH - 1) * _rnd(wp, 8) * _rnd(Cin, 128) * isz
    out_tile_b = _rnd(th * W, 8) * cout_pad * osz
    w_b = _rnd(kkc, 8) * cout_pad * isz
    scratch_b = _rnd(th * W, 8) * (_rnd(kkc, 128) + cout_pad) * 4
    budget = 2 * in_tile_b + 2 * out_tile_b + w_b + cout_pad * 4 + scratch_b
    vmem_limit = int(min(max(4 * budget, 16 * 1024 * 1024), 48 * 1024 * 1024))

    cost = pl.CostEstimate(
        flops=2 * N * H * W * KH * KW * Cin * Cout,
        transcendentals=0,
        bytes_accessed=int(x_tiles.size * isz + w_packed.size * isz
                           + b_packed.size * 4
                           + N * h_tiles * W * cout_pad * osz))

    kernel = functools.partial(_conv_relu_kernel, th=th, wo=W, kh=KH, kw=KW)

    out = pl.pallas_call(
        kernel,
        out_shape=jax.ShapeDtypeStruct((N, h_tiles * W, cout_pad), out_dtype),
        grid_spec=pltpu.PrefetchScalarGridSpec(
            num_scalar_prefetch=0,
            grid=(N, nt),
            in_specs=[
                pl.BlockSpec((1, 1, th + KH - 1, wp, Cin),
                             lambda n, t: (n, t, 0, 0, 0)),
                pl.BlockSpec((kkc, cout_pad), lambda n, t: (0, 0)),
                pl.BlockSpec((1, cout_pad), lambda n, t: (0, 0)),
            ],
            out_specs=pl.BlockSpec((1, th * W, cout_pad),
                                   lambda n, t: (n, t, 0)),
        ),
        compiler_params=pltpu.CompilerParams(
            dimension_semantics=("parallel", "parallel"),
            vmem_limit_bytes=vmem_limit),
        cost_estimate=cost,
    )(x_tiles, w_packed, b_packed)

    out = out.reshape(N, h_tiles, W, cout_pad)[:, :H, :, :Cout]
    return out


def conv_block_forward(x_nchw, weight, bias, **kwargs):
    """PyTorch-layout entry point: NCHW in, NCHW out.

    NOTE: if this block sits inside a larger JAX model, call
    conv_block_forward_nhwc directly and keep activations NHWC end-to-end to
    avoid the two HBM transpose round-trips below.
    """
    x_nhwc = jnp.transpose(x_nchw, (0, 2, 3, 1))
    y = conv_block_forward_nhwc(x_nhwc, weight, bias, **kwargs)
    return jnp.transpose(y, (0, 3, 1, 2))


def _reference(x_nchw, weight, bias):
    pad = (weight.shape[2] + 1) // 2 - 1
    y = jax.lax.conv_general_dilated(
        x_nchw, weight, window_strides=(1, 1),
        padding=[(pad, pad), (pad, pad)],
        dimension_numbers=("NCHW", "OIHW", "NCHW"))
    y = y + bias[None, :, None, None]
    return jnp.maximum(y, 0.0)


if __name__ == "__main__":
    # Small deterministic config: dimensions=2, in_channels=4, out_channels=8.
    N, Cin, H, W = 2, 4, 16, 16
    Cout, K = 8, 5

    key = jax.random.PRNGKey(0)
    kx, kw_key, kb = jax.random.split(key, 3)

    x = jax.random.normal(kx, (N, Cin, H, W), dtype=jnp.float32)
    # PyTorch Conv2d default init: U(-sqrt(k), sqrt(k)), k = 1/(Cin*K*K).
    bound = 1.0 / math.sqrt(Cin * K * K)
    weight = jax.random.uniform(kw_key, (Cout, Cin, K, K), jnp.float32,
                                minval=-bound, maxval=bound)
    bias = jax.random.uniform(kb, (Cout,), jnp.float32,
                              minval=-bound, maxval=bound)

    ref = _reference(x, weight, bias)

    # f32 path: strict check against the lax.conv reference.
    out = conv_block_forward(x, weight, bias)
    jax.block_until_ready(out)
    assert out.shape == (N, Cout, H, W)
    assert jnp.allclose(out, ref, atol=1e-4, rtol=1e-4), "f32 mismatch vs ref"

    # bf16 fast path (recommended on v5e/v6e/v7x MXU): bf16 operands, f32
    # accumulation, so only a loose tolerance is expected.
    out_bf16 = conv_block_forward(x, weight, bias, compute_dtype=jnp.bfloat16)
    jax.block_until_ready(out_bf16)
    assert jnp.allclose(out_bf16, ref, atol=3e-2, rtol=3e-2), "bf16 mismatch"

    # TODO(synk): normalization branches (BatchNorm/GroupNorm/InstanceNorm3d)
    # are not enabled in the default config and are not implemented here.
    print("KERNEL_OK")
</pallas_src>

<mosaic_0001>
module attributes {stable_mosaic.version = 11 : i64} {
  func.func @_conv_relu_kernel(%arg0: i32, %arg1: i32, %arg2: memref<1x1x12x20x4xf32, #tpu.memory_space<vmem>>, %arg3: memref<100x128xf32, #tpu.memory_space<vmem>>, %arg4: memref<1x128xf32, #tpu.memory_space<vmem>>, %arg5: memref<1x128x128xf32, #tpu.memory_space<vmem>>) attributes {dimension_semantics = [#tpu.dimension_semantics<parallel>, #tpu.dimension_semantics<parallel>], iteration_bounds = array<i64: 2, 2>, scalar_prefetch = 0 : i64, scratch_operands = 0 : i64, tpu.core_type = #tpu.core_type<tc>, window_params = [{transform_indices = @transform_0, window_bounds = array<i64: 1, 1, 12, 20, 4>}, {pipeline_mode = #tpu.pipeline_mode<synchronous>, transform_indices = @transform_1, window_bounds = array<i64: 100, 128>}, {pipeline_mode = #tpu.pipeline_mode<synchronous>, transform_indices = @transform_2, window_bounds = array<i64: 1, 128>}, {transform_indices = @transform_3, window_bounds = array<i64: 1, 128, 128>}]} {
    %c0 = arith.constant 0 : index
    %c0_0 = arith.constant 0 : index
    %c0_1 = arith.constant 0 : index
    %c0_2 = arith.constant 0 : index
    %c0_3 = arith.constant 0 : index
    %0 = vector.load %arg2[%c0, %c0_0, %c0_1, %c0_2, %c0_3] : memref<1x1x12x20x4xf32, #tpu.memory_space<vmem>>, vector<1x1x8x16x4xf32>
    %1 = vector.shape_cast %0 : vector<1x1x8x16x4xf32> to vector<8x16x4xf32>
    %c0_4 = arith.constant 0 : index
    %c0_5 = arith.constant 0 : index
    %c0_6 = arith.constant 0 : index
    %c1 = arith.constant 1 : index
    %c0_7 = arith.constant 0 : index
    %2 = vector.load %arg2[%c0_4, %c0_5, %c0_6, %c1, %c0_7] : memref<1x1x12x20x4xf32, #tpu.memory_space<vmem>>, vector<1x1x8x16x4xf32>
    %3 = vector.shape_cast %2 : vector<1x1x8x16x4xf32> to vector<8x16x4xf32>
    %c0_8 = arith.constant 0 : index
    %c0_9 = arith.constant 0 : index
    %c0_10 = arith.constant 0 : index
    %c2 = arith.constant 2 : index
    %c0_11 = arith.constant 0 : index
    %4 = vector.load %arg2[%c0_8, %c0_9, %c0_10, %c2, %c0_11] : memref<1x1x12x20x4xf32, #tpu.memory_space<vmem>>, vector<1x1x8x16x4xf32>
    %5 = vector.shape_cast %4 : vector<1x1x8x16x4xf32> to vector<8x16x4xf32>
    %c0_12 = arith.constant 0 : index
    %c0_13 = arith.constant 0 : index
    %c0_14 = arith.constant 0 : index
    %c3 = arith.constant 3 : index
    %c0_15 = arith.constant 0 : index
    %6 = vector.load %arg2[%c0_12, %c0_13, %c0_14, %c3, %c0_15] : memref<1x1x12x20x4xf32, #tpu.memory_space<vmem>>, vector<1x1x8x16x4xf32>
    %7 = vector.shape_cast %6 : vector<1x1x8x16x4xf32> to vector<8x16x4xf32>
    %c0_16 = arith.constant 0 : index
    %c0_17 = arith.constant 0 : index
    %c0_18 = arith.constant 0 : index
    %c4 = arith.constant 4 : index
    %c0_19 = arith.constant 0 : index
    %8 = vector.load %arg2[%c0_16, %c0_17, %c0_18, %c4, %c0_19] : memref<1x1x12x20x4xf32, #tpu.memory_space<vmem>>, vector<1x1x8x16x4xf32>
    %9 = vector.shape_cast %8 : vector<1x1x8x16x4xf32> to vector<8x16x4xf32>
    %c0_20 = arith.constant 0 : index
    %c0_21 = arith.constant 0 : index
    %c1_22 = arith.constant 1 : index
    %c0_23 = arith.constant 0 : index
    %c0_24 = arith.constant 0 : index
    %10 = vector.load %arg2[%c0_20, %c0_21, %c1_22, %c0_23, %c0_24] : memref<1x1x12x20x4xf32, #tpu.memory_space<vmem>>, vector<1x1x8x16x4xf32>
    %11 = vector.shape_cast %10 : vector<1x1x8x16x4xf32> to vector<8x16x4xf32>
    %c0_25 = arith.constant 0 : index
    %c0_26 = arith.constant 0 : index
    %c1_27 = arith.constant 1 : index
    %c1_28 = arith.constant 1 : index
    %c0_29 = arith.constant 0 : index
    %12 = vector.load %arg2[%c0_25, %c0_26, %c1_27, %c1_28, %c0_29] : memref<1x1x12x20x4xf32, #tpu.memory_space<vmem>>, vector<1x1x8x16x4xf32>
    %13 = vector.shape_cast %12 : vector<1x1x8x16x4xf32> to vector<8x16x4xf32>
    %c0_30 = arith.constant 0 : index
    %c0_31 = arith.constant 0 : index
    %c1_32 = arith.constant 1 : index
    %c2_33 = arith.constant 2 : index
    %c0_34 = arith.constant 0 : index
    %14 = vector.load %arg2[%c0_30, %c0_31, %c1_32, %c2_33, %c0_34] : memref<1x1x12x20x4xf32, #tpu.memory_space<vmem>>, vector<1x1x8x16x4xf32>
    %15 = vector.shape_cast %14 : vector<1x1x8x16x4xf32> to vector<8x16x4xf32>
    %c0_35 = arith.constant 0 : index
    %c0_36 = arith.constant 0 : index
    %c1_37 = arith.constant 1 : index
    %c3_38 = arith.constant 3 : index
    %c0_39 = arith.constant 0 : index
    %16 = vector.load %arg2[%c0_35, %c0_36, %c1_37, %c3_38, %c0_39] : memref<1x1x12x20x4xf32, #tpu.memory_space<vmem>>, vector<1x1x8x16x4xf32>
    %17 = vector.shape_cast %16 : vector<1x1x8x16x4xf32> to vector<8x16x4xf32>
    %c0_40 = arith.constant 0 : index
    %c0_41 = arith.constant 0 : index
    %c1_42 = arith.constant 1 : index
    %c4_43 = arith.constant 4 : index
    %c0_44 = arith.constant 0 : index
    %18 = vector.load %arg2[%c0_40, %c0_41, %c1_42, %c4_43, %c0_44] : memref<1x1x12x20x4xf32, #tpu.memory_space<vmem>>, vector<1x1x8x16x4xf32>
    %19 = vector.shape_cast %18 : vector<1x1x8x16x4xf32> to vector<8x16x4xf32>
    %c0_45 = arith.constant 0 : index
    %c0_46 = arith.constant 0 : index
    %c2_47 = arith.constant 2 : index
    %c0_48 = arith.constant 0 : index
    %c0_49 = arith.constant 0 : index
    %20 = vector.load %arg2[%c0_45, %c0_46, %c2_47, %c0_48, %c0_49] : memref<1x1x12x20x4xf32, #tpu.memory_space<vmem>>, vector<1x1x8x16x4xf32>
    %21 = vector.shape_cast %20 : vector<1x1x8x16x4xf32> to vector<8x16x4xf32>
    %c0_50 = arith.constant 0 : index
    %c0_51 = arith.constant 0 : index
    %c2_52 = arith.constant 2 : index
    %c1_53 = arith.constant 1 : index
    %c0_54 = arith.constant 0 : index
    %22 = vector.load %arg2[%c0_50, %c0_51, %c2_52, %c1_53, %c0_54] : memref<1x1x12x20x4xf32, #tpu.memory_space<vmem>>, vector<1x1x8x16x4xf32>
    %23 = vector.shape_cast %22 : vector<1x1x8x16x4xf32> to vector<8x16x4xf32>
    %c0_55 = arith.constant 0 : index
    %c0_56 = arith.constant 0 : index
    %c2_57 = arith.constant 2 : index
    %c2_58 = arith.constant 2 : index
    %c0_59 = arith.constant 0 : index
    %24 = vector.load %arg2[%c0_55, %c0_56, %c2_57, %c2_58, %c0_59] : memref<1x1x12x20x4xf32, #tpu.memory_space<vmem>>, vector<1x1x8x16x4xf32>
    %25 = vector.shape_cast %24 : vector<1x1x8x16x4xf32> to vector<8x16x4xf32>
    %c0_60 = arith.constant 0 : index
    %c0_61 = arith.constant 0 : index
    %c2_62 = arith.constant 2 : index
    %c3_63 = arith.constant 3 : index
    %c0_64 = arith.constant 0 : index
    %26 = vector.load %arg2[%c0_60, %c0_61, %c2_62, %c3_63, %c0_64] : memref<1x1x12x20x4xf32, #tpu.memory_space<vmem>>, vector<1x1x8x16x4xf32>
    %27 = vector.shape_cast %26 : vector<1x1x8x16x4xf32> to vector<8x16x4xf32>
    %c0_65 = arith.constant 0 : index
    %c0_66 = arith.constant 0 : index
    %c2_67 = arith.constant 2 : index
    %c4_68 = arith.constant 4 : index
    %c0_69 = arith.constant 0 : index
    %28 = vector.load %arg2[%c0_65, %c0_66, %c2_67, %c4_68, %c0_69] : memref<1x1x12x20x4xf32, #tpu.memory_space<vmem>>, vector<1x1x8x16x4xf32>
    %29 = vector.shape_cast %28 : vector<1x1x8x16x4xf32> to vector<8x16x4xf32>
    %c0_70 = arith.constant 0 : index
    %c0_71 = arith.constant 0 : index
    %c3_72 = arith.constant 3 : index
    %c0_73 = arith.constant 0 : index
    %c0_74 = arith.constant 0 : index
    %30 = vector.load %arg2[%c0_70, %c0_71, %c3_72, %c0_73, %c0_74] : memref<1x1x12x20x4xf32, #tpu.memory_space<vmem>>, vector<1x1x8x16x4xf32>
    %31 = vector.shape_cast %30 : vector<1x1x8x16x4xf32> to vector<8x16x4xf32>
    %c0_75 = arith.constant 0 : index
    %c0_76 = arith.constant 0 : index
    %c3_77 = arith.constant 3 : index
    %c1_78 = arith.constant 1 : index
    %c0_79 = arith.constant 0 : index
    %32 = vector.load %arg2[%c0_75, %c0_76, %c3_77, %c1_78, %c0_79] : memref<1x1x12x20x4xf32, #tpu.memory_space<vmem>>, vector<1x1x8x16x4xf32>
    %33 = vector.shape_cast %32 : vector<1x1x8x16x4xf32> to vector<8x16x4xf32>
    %c0_80 = arith.constant 0 : index
    %c0_81 = arith.constant 0 : index
    %c3_82 = arith.constant 3 : index
    %c2_83 = arith.constant 2 : index
    %c0_84 = arith.constant 0 : index
    %34 = vector.load %arg2[%c0_80, %c0_81, %c3_82, %c2_83, %c0_84] : memref<1x1x12x20x4xf32, #tpu.memory_space<vmem>>, vector<1x1x8x16x4xf32>
    %35 = vector.shape_cast %34 : vector<1x1x8x16x4xf32> to vector<8x16x4xf32>
    %c0_85 = arith.constant 0 : index
    %c0_86 = arith.constant 0 : index
    %c3_87 = arith.constant 3 : index
    %c3_88 = arith.constant 3 : index
    %c0_89 = arith.constant 0 : index
    %36 = vector.load %arg2[%c0_85, %c0_86, %c3_87, %c3_88, %c0_89] : memref<1x1x12x20x4xf32, #tpu.memory_space<vmem>>, vector<1x1x8x16x4xf32>
    %37 = vector.shape_cast %36 : vector<1x1x8x16x4xf32> to vector<8x16x4xf32>
    %c0_90 = arith.constant 0 : index
    %c0_91 = arith.constant 0 : index
    %c3_92 = arith.constant 3 : index
    %c4_93 = arith.constant 4 : index
    %c0_94 = arith.constant 0 : index
    %38 = vector.load %arg2[%c0_90, %c0_91, %c3_92, %c4_93, %c0_94] : memref<1x1x12x20x4xf32, #tpu.memory_space<vmem>>, vector<1x1x8x16x4xf32>
    %39 = vector.shape_cast %38 : vector<1x1x8x16x4xf32> to vector<8x16x4xf32>
    %c0_95 = arith.constant 0 : index
    %c0_96 = arith.constant 0 : index
    %c4_97 = arith.constant 4 : index
    %c0_98 = arith.constant 0 : index
    %c0_99 = arith.constant 0 : index
    %40 = vector.load %arg2[%c0_95, %c0_96, %c4_97, %c0_98, %c0_99] : memref<1x1x12x20x4xf32, #tpu.memory_space<vmem>>, vector<1x1x8x16x4xf32>
    %41 = vector.shape_cast %40 : vector<1x1x8x16x4xf32> to vector<8x16x4xf32>
    %c0_100 = arith.constant 0 : index
    %c0_101 = arith.constant 0 : index
    %c4_102 = arith.constant 4 : index
    %c1_103 = arith.constant 1 : index
    %c0_104 = arith.constant 0 : index
    %42 = vector.load %arg2[%c0_100, %c0_101, %c4_102, %c1_103, %c0_104] : memref<1x1x12x20x4xf32, #tpu.memory_space<vmem>>, vector<1x1x8x16x4xf32>
    %43 = vector.shape_cast %42 : vector<1x1x8x16x4xf32> to vector<8x16x4xf32>
    %c0_105 = arith.constant 0 : index
    %c0_106 = arith.constant 0 : index
    %c4_107 = arith.constant 4 : index
    %c2_108 = arith.constant 2 : index
    %c0_109 = arith.constant 0 : index
    %44 = vector.load %arg2[%c0_105, %c0_106, %c4_107, %c2_108, %c0_109] : memref<1x1x12x20x4xf32, #tpu.memory_space<vmem>>, vector<1x1x8x16x4xf32>
    %45 = vector.shape_cast %44 : vector<1x1x8x16x4xf32> to vector<8x16x4xf32>
    %c0_110 = arith.constant 0 : index
    %c0_111 = arith.constant 0 : index
    %c4_112 = arith.constant 4 : index
    %c3_113 = arith.constant 3 : index
    %c0_114 = arith.constant 0 : index
    %46 = vector.load %arg2[%c0_110, %c0_111, %c4_112, %c3_113, %c0_114] : memref<1x1x12x20x4xf32, #tpu.memory_space<vmem>>, vector<1x1x8x16x4xf32>
    %47 = vector.shape_cast %46 : vector<1x1x8x16x4xf32> to vector<8x16x4xf32>
    %c0_115 = arith.constant 0 : index
    %c0_116 = arith.constant 0 : index
    %c4_117 = arith.constant 4 : index
    %c4_118 = arith.constant 4 : index
    %c0_119 = arith.constant 0 : index
    %48 = vector.load %arg2[%c0_115, %c0_116, %c4_117, %c4_118, %c0_119] : memref<1x1x12x20x4xf32, #tpu.memory_space<vmem>>, vector<1x1x8x16x4xf32>
    %49 = vector.shape_cast %48 : vector<1x1x8x16x4xf32> to vector<8x16x4xf32>
    %50 = tpu.concatenate %1, %3, %5, %7, %9, %11, %13, %15, %17, %19, %21, %23, %25, %27, %29, %31 in 2 : vector<8x16x4xf32>, vector<8x16x4xf32>, vector<8x16x4xf32>, vector<8x16x4xf32>, vector<8x16x4xf32>, vector<8x16x4xf32>, vector<8x16x4xf32>, vector<8x16x4xf32>, vector<8x16x4xf32>, vector<8x16x4xf32>, vector<8x16x4xf32>, vector<8x16x4xf32>, vector<8x16x4xf32>, vector<8x16x4xf32>, vector<8x16x4xf32>, vector<8x16x4xf32> -> vector<8x16x64xf32>
    %51 = tpu.concatenate %33, %35, %37, %39, %41, %43, %45, %47, %49 in 2 : vector<8x16x4xf32>, vector<8x16x4xf32>, vector<8x16x4xf32>, vector<8x16x4xf32>, vector<8x16x4xf32>, vector<8x16x4xf32>, vector<8x16x4xf32>, vector<8x16x4xf32>, vector<8x16x4xf32> -> vector<8x16x36xf32>
    %52 = tpu.concatenate %50, %51 in 2 : vector<8x16x64xf32>, vector<8x16x36xf32> -> vector<8x16x100xf32>
    %53 = vector.shape_cast %52 : vector<8x16x100xf32> to vector<128x100xf32>
    %c0_120 = arith.constant 0 : index
    %c0_121 = arith.constant 0 : index
    %54 = vector.load %arg3[%c0_120, %c0_121] : memref<100x128xf32, #tpu.memory_space<vmem>>, vector<100x128xf32>
    %cst = arith.constant dense<0.000000e+00> : vector<128x128xf32>
    %55 = tpu.matmul %53, %54, %cst {dimension_numbers = #tpu.dot_dimension_numbers<[1], [0], [0], [1], [0, 0, 1, 1], [], []>} : vector<128x100xf32>, vector<100x128xf32>, vector<128x128xf32> -> vector<128x128xf32>
    %c0_122 = arith.constant 0 : index
    %c0_123 = arith.constant 0 : index
    %56 = vector.load %arg4[%c0_122, %c0_123] : memref<1x128xf32, #tpu.memory_space<vmem>>, vector<1x128xf32>
    %57 = vector.broadcast %56 : vector<1x128xf32> to vector<128x128xf32>
    %58 = arith.addf %55, %57 : vector<128x128xf32>
    %cst_124 = arith.constant 0.000000e+00 : f32
    %59 = vector.broadcast %cst_124 : f32 to vector<128x128xf32>
    %60 = arith.maximumf %58, %59 : vector<128x128xf32>
    %c0_125 = arith.constant 0 : index
    %c0_126 = arith.constant 0 : index
    %c0_127 = arith.constant 0 : index
    %61 = vector.load %arg5[%c0_125, %c0_126, %c0_127] : memref<1x128x128xf32, #tpu.memory_space<vmem>>, vector<1x128x128xf32>
    %62 = vector.shape_cast %61 : vector<1x128x128xf32> to vector<128x128xf32>
    %63 = vector.shape_cast %60 : vector<128x128xf32> to vector<1x128x128xf32>
    tpu.vector_store %arg5[%c0_125, %c0_126, %c0_127], %63 {strides = array<i32>} : memref<1x128x128xf32, #tpu.memory_space<vmem>>, vector<1x128x128xf32>,
    return
  }
  func.func @transform_0(%arg0: i32, %arg1: i32) -> (i32, i32, i32, i32, i32) {
    %c0_i32 = arith.constant 0 : i32
    %c0_i32_0 = arith.constant 0 : i32
    %c0_i32_1 = arith.constant 0 : i32
    %c0_i32_2 = arith.constant 0 : i32
    return %arg0, %arg1, %c0_i32, %c0_i32_0, %c0_i32_1 : i32, i32, i32, i32, i32
  }
  func.func @transform_1(%arg0: i32, %arg1: i32) -> (i32, i32) {
    %c0_i32 = arith.constant 0 : i32
    %c0_i32_0 = arith.constant 0 : i32
    %c0_i32_1 = arith.constant 0 : i32
    return %c0_i32, %c0_i32_0 : i32, i32
  }
  func.func @transform_2(%arg0: i32, %arg1: i32) -> (i32, i32) {
    %c0_i32 = arith.constant 0 : i32
    %c0_i32_0 = arith.constant 0 : i32
    %c0_i32_1 = arith.constant 0 : i32
    return %c0_i32, %c0_i32_0 : i32, i32
  }
  func.func @transform_3(%arg0: i32, %arg1: i32) -> (i32, i32, i32) {
    %c0_i32 = arith.constant 0 : i32
    %c0_i32_0 = arith.constant 0 : i32
    return %arg0, %arg1, %c0_i32 : i32, i32, i32
  }
}

</mosaic_0001>

<llo_original>
// kernel: tpu_custom_call.1
$region0: #{tpu_custom_call.1}
  #allocation0 [shape = 'u32[]', space=smem, size = 0x4, offset = 0x4, fixed_abs, tag = 'smem constant byte address 0x4 - core index']
  #allocation1 [shape = 'u32[72,128]{1,0:T(1,128)}', space=vmem, size = 0x9000, scoped, tag = 'internal scratch']
  %s0 = inlined_call_operand.vmem [shape: f32[2,2,12,20,4], index: 0, kind: input, shape index: {}]
  %s1 = inlined_call_operand.vmem [shape: f32[100,128], index: 1, kind: input, shape index: {}]
  %s2 = inlined_call_operand.vmem [shape: f32[1,128], index: 2, kind: input, shape index: {}]
  %s3 = inlined_call_operand.hbm [shape: f32[2,256,128], index: 3, kind: output, shape index: {}]
  %s4 = sld [smem:[#allocation0]]
  $region45: #{tpu_custom_call.1} parent=0
    _
  %s6 = ssub.s32 1, %s4
  %s7 = scalar_select 0, %s6, %s4
  $region1: #{tpu_custom_call.1} parent=0
    #allocation2 [shape = 'u8[131072]{0}', space=vmem, size = 0x20000, scoped, tag = 'output window, operand 0']
    #allocation3 [shape = 's32[2]{0}', space=sflag, size = 0x8, scoped, tag = 'scoped memory for tpu_custom_call.1']
    %8 = vsyncpa [#allocation3], 0
    %s9 = scalar_lea.sflag [#allocation3], 1
    %10 = vsyncpa %s9, 0
    loop: start=0, step=1, limit=6
    $region2: #{tpu_custom_call.1} parent=1 // loop_pre_header
      _
    $region3: #{tpu_custom_call.1} parent=1 // loop_header
      %s12 = sphi 0, %s16
      %p13 = scmp.ge.s32.totalorder %s12, 6
      %s19 = sphi 0, %s31
      %s20 = sphi 0, %s27
      %s21 = sphi 0, %s19
      %s22 = sphi 0, %s20
      %s23 = sphi 0, %s21
      %s24 = sphi 0, %s22
      %s36 = sphi 0, %s38
      %s39 = sphi 0, %s36
      %s40 = sphi 0, %s39
      %s56 = sphi 0, %s40
      %s60 = sphi 0, %s60
      %s62 = sphi 0, %s60
      %s63 = sphi 0, %s62
      %s77 = sphi 0, %s63
      %s81 = sphi 0, %s81
      %s83 = sphi 0, %s81
      %s84 = sphi 0, %s83
      %s98 = sphi 0, %s84
      %s106 = sphi 0, %s108
      %s109 = sphi 0, %s106
      %s110 = sphi 0, %s109
      %s126 = sphi 0, %s110
    $region4: #{tpu_custom_call.1} parent=1 // loop_header_branch
      %15 = sbr.rel (%p13) target = $region8
    $region5: #{tpu_custom_call.1} parent=1 // loop_body
      %s17 = ssub.s32 %s12, 1
      %s18 = ssub.s32 %s12, 2
      %s25 = sadd.s32 1, %s20
      %p26 = scmp.ge.s32.totalorder %s25, 2
      %s27 = scalar_select %p26, 0, %s25
      %s28 = sadd.s32 1, %s19
      %s29 = scalar_select %p26, %s28, %s19
      %p30 = scmp.ge.s32.totalorder %s29, 2
      %s31 = scalar_select %p30, 0, %s29
      %s32 = ssub.s32 %s19, %s31
      %s33 = ssub.s32 %s20, %s27
      %s34 = sor.u32 %s32, %s33
      %p35 = scmp.eq.s32.totalorder %s34, 0
      %s37 = sadd.s32 %s36, 1
      %s38 = scalar_select %p35, %s36, %s37
      %p41 = pneg %p35
      %p42 = scmp.eq.s32.totalorder %s12, 3
      %p43 = por %p41, %p42
      %p44 = scmp.ne.s32.totalorder %s36, %s39
      %p45 = scmp.eq.s32.totalorder %s12, 0
      %p46 = por %p44, %p45
      %p47 = scmp.ne.s32.totalorder %s36, %s39
      %p48 = scmp.eq.s32.totalorder %s17, 3
      %p49 = por %p47, %p48
      %p50 = scmp.ne.s32.totalorder %s39, %s40
      %p51 = scmp.eq.s32.totalorder %s17, 0
      %p52 = por %p50, %p51
      %p53 = scmp.ne.s32.totalorder %s39, %s40
      %p54 = scmp.eq.s32.totalorder %s18, 3
      %p55 = por %p53, %p54
      %p57 = scmp.ne.s32.totalorder %s40, %s56
      %p58 = scmp.eq.s32.totalorder %s18, 0
      %p59 = por %p57, %p58
      %s61 = sadd.s32 %s60, 1
      %p64 = scmp.eq.s32.totalorder %s12, 3
      %p65 = scmp.ne.s32.totalorder %s60, %s62
      %p66 = scmp.eq.s32.totalorder %s12, 0
      %p67 = por %p65, %p66
      %p68 = scmp.ne.s32.totalorder %s60, %s62
      %p69 = scmp.eq.s32.totalorder %s17, 3
      %p70 = por %p68, %p69
      %p71 = scmp.ne.s32.totalorder %s62, %s63
      %p72 = scmp.eq.s32.totalorder %s17, 0
      %p73 = por %p71, %p72
      %p74 = scmp.ne.s32.totalorder %s62, %s63
      %p75 = scmp.eq.s32.totalorder %s18, 3
      %p76 = por %p74, %p75
      %p78 = scmp.ne.s32.totalorder %s63, %s77
      %p79 = scmp.eq.s32.totalorder %s18, 0
      %p80 = por %p78, %p79
      %s82 = sadd.s32 %s81, 1
      %p85 = scmp.eq.s32.totalorder %s12, 3
      %p86 = scmp.ne.s32.totalorder %s81, %s83
      %p87 = scmp.eq.s32.totalorder %s12, 0
      %p88 = por %p86, %p87
      %p89 = scmp.ne.s32.totalorder %s81, %s83
      %p90 = scmp.eq.s32.totalorder %s17, 3
      %p91 = por %p89, %p90
      %p92 = scmp.ne.s32.totalorder %s83, %s84
      %p93 = scmp.eq.s32.totalorder %s17, 0
      %p94 = por %p92, %p93
      %p95 = scmp.ne.s32.totalorder %s83, %s84
      %p96 = scmp.eq.s32.totalorder %s18, 3
      %p97 = por %p95, %p96
      %p99 = scmp.ne.s32.totalorder %s84, %s98
      %p100 = scmp.eq.s32.totalorder %s18, 0
      %p101 = por %p99, %p100
      %s102 = ssub.s32 %s19, %s31
      %s103 = ssub.s32 %s20, %s27
      %s104 = sor.u32 %s102, %s103
      %p105 = scmp.eq.s32.totalorder %s104, 0
      %s107 = sadd.s32 %s106, 1
      %s108 = scalar_select %p105, %s106, %s107
      %p111 = pneg %p105
      %p112 = scmp.eq.s32.totalorder %s12, 3
      %p113 = por %p111, %p112
      %p114 = scmp.ne.s32.totalorder %s106, %s109
      %p115 = scmp.eq.s32.totalorder %s12, 0
      %p116 = por %p114, %p115
      %p117 = scmp.ne.s32.totalorder %s106, %s109
      %p118 = scmp.eq.s32.totalorder %s17, 3
      %p119 = por %p117, %p118
      %p120 = scmp.ne.s32.totalorder %s109, %s110
      %p121 = scmp.eq.s32.totalorder %s17, 0
      %p122 = por %p120, %p121
      %p123 = scmp.ne.s32.totalorder %s109, %s110
      %p124 = scmp.eq.s32.totalorder %s18, 3
      %p125 = por %p123, %p124
      %p127 = scmp.ne.s32.totalorder %s110, %s126
      %p128 = scmp.eq.s32.totalorder %s18, 0
      %p129 = por %p127, %p128
      %p130 = scmp.le.s32.totalorder 1, %s12
      %p131 = scmp.lt.s32.totalorder %s12, 5
      %p132 = pnand %p130, %p131
      %p133 = pneg %p132
      // Predicated region
      $region9: #{tpu_custom_call.1} parent=5 // pred_check
        _
      $region10: #{tpu_custom_call.1} parent=5 // pred_check_branch
        %135 = sbr.rel (%p132) target = $region12
      $region11: #{tpu_custom_call.1} parent=5 // pred_region
        %s136 = ssub.s32 %s12, 1
        // Predicated region
        $region13: #{tpu_custom_call.1} parent=11 // pred_check
          %p137 = pneg %p73
        $region14: #{tpu_custom_call.1} parent=11 // pred_check_branch
          %139 = sbr.rel (%p137) target = $region16
        $region15: #{tpu_custom_call.1} parent=11 // pred_region
          _
        $region16: #{tpu_custom_call.1} parent=11 // pred_fallthru
          _
        // Predicated region
        $region17: #{tpu_custom_call.1} parent=11 // pred_check
          %p140 = pneg %p94
        $region18: #{tpu_custom_call.1} parent=11 // pred_check_branch
          %142 = sbr.rel (%p140) target = $region20
        $region19: #{tpu_custom_call.1} parent=11 // pred_region
          _
        $region20: #{tpu_custom_call.1} parent=11 // pred_fallthru
          _
      $region12: #{tpu_custom_call.1} parent=5 // pred_fallthru
        _
      %p143 = scmp.lt.s32.totalorder %s12, 4
      // Predicated region
      $region21: #{tpu_custom_call.1} parent=5 // pred_check
        %p144 = pneg %p143
      $region22: #{tpu_custom_call.1} parent=5 // pred_check_branch
        %146 = sbr.rel (%p144) target = $region24
      $region23: #{tpu_custom_call.1} parent=5 // pred_region
        // Predicated region
        $region25: #{tpu_custom_call.1} parent=23 // pred_check
          %p147 = pneg %p46
        $region26: #{tpu_custom_call.1} parent=23 // pred_check_branch
          %149 = sbr.rel (%p147) target = $region28
        $region27: #{tpu_custom_call.1} parent=23 // pred_region
          %p150 = scmp.lt.s32.totalorder %s19, 1
          %s151 = scalar_select %p150, %s19, 1
          %p152 = scmp.lt.s32.totalorder %s20, 1
          %s153 = scalar_select %p152, %s20, 1
          %s154 = smul.addr %s153, 36
          %s155 = smul.addr %s151, 72
          %s156 = sadd.s32 %s154, %s155
          %s157 = smul.addr %s156, 8
          %s158 = scalar_lea.vmem %s0, %s157
        $region28: #{tpu_custom_call.1} parent=23 // pred_fallthru
          _
      $region24: #{tpu_custom_call.1} parent=5 // pred_fallthru
        _
      %p159 = scmp.le.s32.totalorder 1, %s12
      %p160 = scmp.lt.s32.totalorder %s12, 5
      %p161 = pnand %p159, %p160
      %p162 = pneg %p161
      // Predicated region
      $region29: #{tpu_custom_call.1} parent=5 // pred_check
        _
      $region30: #{tpu_custom_call.1} parent=5 // pred_check_branch
        %164 = sbr.rel (%p161) target = $region32
      $region31: #{tpu_custom_call.1} parent=5 // pred_region
        %s165 = ssub.s32 %s12, 1
        %p166 = scmp.lt.s32.totalorder %s21, 1
        %s167 = scalar_select %p166, %s21, 1
        %p168 = scmp.lt.s32.totalorder %s22, 1
        %s169 = scalar_select %p168, %s22, 1
        %s170 = smul.addr %s169, 36
        %s171 = smul.addr %s167, 72
        %s172 = sadd.s32 %s170, %s171
        %s173 = smul.addr %s172, 8
        %s174 = scalar_lea.vmem %s0, %s173
        %p175 = pneg %p52
        %p176 = pneg %p49
        %p177 = pneg %p73
        %p178 = pneg %p70
        %p179 = pneg %p94
        %p180 = pneg %p91
        %p181 = pneg %p122
        %p182 = pneg %p119
        %s183 = sand.u32 %s109, 1
        %s184 = scalar_lea.sflag [#allocation3], %s183
        %s185 = sand.u32 %s109, 1
        %s186 = smul.addr %s185, 128
        %s187 = scalar_lea.vmem [#allocation2], %s186
        %p188 = scmp.lt.s32.totalorder %s21, 1
        %s189 = scalar_select %p188, %s21, 1
        %p190 = scmp.lt.s32.totalorder %s22, 1
        %s191 = scalar_select %p190, %s22, 1
        %s192 = smul.addr %s191, 36
        %s193 = smul.addr %s189, 72
        %s194 = sadd.s32 %s192, %s193
        %s195 = smul.addr %s194, 8
        %s196 = scalar_lea.vmem %s0, %s195
        %s197 = smul.u32 16, %s22
        %v198 = vld [vmem:[%s196] sm:$0xff]
        %v199 = vld [vmem:[%s196 + $0x8] sm:$0xff]
        %v200 = vld [vmem:[%s196 + $0x18] sm:$0xff]
        %v201 = vld [vmem:[%s196 + $0x20] sm:$0xff]
        %v202 = vld [vmem:[%s196 + $0x30] sm:$0xff]
        %v203 = vld [vmem:[%s196 + $0x38] sm:$0xff]
        %v204 = vld [vmem:[%s196 + $0x48] sm:$0xff]
        %v205 = vld [vmem:[%s196 + $0x50] sm:$0xff]
        %v206 = vld [vmem:[%s196 + $0x60] sm:$0xff]
        %v207 = vld [vmem:[%s196 + $0x68] sm:$0xff]
        %v208 = vld [vmem:[%s196 + $0x78] sm:$0xff]
        %v209 = vld [vmem:[%s196 + $0x80] sm:$0xff]
        %v210 = vld [vmem:[%s196 + $0x90] sm:$0xff]
        %v211 = vld [vmem:[%s196 + $0x98] sm:$0xff]
        %v212 = vld [vmem:[%s196 + $0xa8] sm:$0xff]
        %v213 = vld [vmem:[%s196 + $0xb0] sm:$0xff]
        %v214 = vld [vmem:[%s196 + $0x1] sm:$0xff]
        %v215 = vld [vmem:[%s196 + $0x9] sm:$0xff]
        %v216 = vld [vmem:[%s196 + $0x19] sm:$0xff]
        %v217 = vld [vmem:[%s196 + $0x21] sm:$0xff]
        %v218 = vld [vmem:[%s196 + $0x31] sm:$0xff]
        %v219 = vld [vmem:[%s196 + $0x39] sm:$0xff]
        %v220 = vld [vmem:[%s196 + $0x49] sm:$0xff]
        %v221 = vld [vmem:[%s196 + $0x51] sm:$0xff]
        %v222 = vld [vmem:[%s196 + $0x61] sm:$0xff]
        %v223 = vld [vmem:[%s196 + $0x69] sm:$0xff]
        %v224 = vld [vmem:[%s196 + $0x79] sm:$0xff]
        %v225 = vld [vmem:[%s196 + $0x81] sm:$0xff]
        %v226 = vld [vmem:[%s196 + $0x91] sm:$0xff]
        %v227 = vld [vmem:[%s196 + $0x99] sm:$0xff]
        %v228 = vld [vmem:[%s196 + $0xa9] sm:$0xff]
        %v229 = vld [vmem:[%s196 + $0xb1] sm:$0xff]
        %v230 = vld [vmem:[%s196 + $0x2] sm:$0xff]
        %v231 = vld [vmem:[%s196 + $0xa] sm:$0xff]
        %v232 = vld [vmem:[%s196 + $0x1a] sm:$0xff]
        %v233 = vld [vmem:[%s196 + $0x22] sm:$0xff]
        %v234 = vld [vmem:[%s196 + $0x32] sm:$0xff]
        %v235 = vld [vmem:[%s196 + $0x3a] sm:$0xff]
        %v236 = vld [vmem:[%s196 + $0x4a] sm:$0xff]
        %v237 = vld [vmem:[%s196 + $0x52] sm:$0xff]
        %v238 = vld [vmem:[%s196 + $0x62] sm:$0xff]
        %v239 = vld [vmem:[%s196 + $0x6a] sm:$0xff]
        %v240 = vld [vmem:[%s196 + $0x7a] sm:$0xff]
        %v241 = vld [vmem:[%s196 + $0x82] sm:$0xff]
        %v242 = vld [vmem:[%s196 + $0x92] sm:$0xff]
        %v243 = vld [vmem:[%s196 + $0x9a] sm:$0xff]
        %v244 = vld [vmem:[%s196 + $0xaa] sm:$0xff]
        %v245 = vld [vmem:[%s196 + $0xb2] sm:$0xff]
        %v246 = vld [vmem:[%s196 + $0x3] sm:$0xff]
        %v247 = vld [vmem:[%s196 + $0xb] sm:$0xff]
        %v248 = vld [vmem:[%s196 + $0x1b] sm:$0xff]
        %v249 = vld [vmem:[%s196 + $0x23] sm:$0xff]
        %v250 = vld [vmem:[%s196 + $0x33] sm:$0xff]
        %v251 = vld [vmem:[%s196 + $0x3b] sm:$0xff]
        %v252 = vld [vmem:[%s196 + $0x4b] sm:$0xff]
        %v253 = vld [vmem:[%s196 + $0x53] sm:$0xff]
        %v254 = vld [vmem:[%s196 + $0x63] sm:$0xff]
        %v255 = vld [vmem:[%s196 + $0x6b] sm:$0xff]
        %v256 = vld [vmem:[%s196 + $0x7b] sm:$0xff]
        %v257 = vld [vmem:[%s196 + $0x83] sm:$0xff]
        %v258 = vld [vmem:[%s196 + $0x93] sm:$0xff]
        %v259 = vld [vmem:[%s196 + $0x9b] sm:$0xff]
        %v260 = vld [vmem:[%s196 + $0xab] sm:$0xff]
        %v261 = vld [vmem:[%s196 + $0xb3] sm:$0xff]
        %v262 = vld [vmem:[%s196 + $0x4] sm:$0xff]
        %v263 = vld [vmem:[%s196 + $0xc] sm:$0xff]
        %v264 = vld [vmem:[%s196 + $0x1c] sm:$0xff]
        %v265 = vld [vmem:[%s196 + $0x24] sm:$0xff]
        %v266 = vld [vmem:[%s196 + $0x34] sm:$0xff]
        %v267 = vld [vmem:[%s196 + $0x3c] sm:$0xff]
        %v268 = vld [vmem:[%s196 + $0x4c] sm:$0xff]
        %v269 = vld [vmem:[%s196 + $0x54] sm:$0xff]
        %v270 = vld [vmem:[%s196 + $0x64] sm:$0xff]
        %v271 = vld [vmem:[%s196 + $0x6c] sm:$0xff]
        %v272 = vld [vmem:[%s196 + $0x7c] sm:$0xff]
        %v273 = vld [vmem:[%s196 + $0x84] sm:$0xff]
        %v274 = vld [vmem:[%s196 + $0x94] sm:$0xff]
        %v275 = vld [vmem:[%s196 + $0x9c] sm:$0xff]
        %v276 = vld [vmem:[%s196 + $0xac] sm:$0xff]
        %v277 = vld [vmem:[%s196 + $0xb4] sm:$0xff]
        %s278 = scalar_lea.vmem %s196, 24
        %v279 = vld [vmem:[%s278] sm:$0xff]
        %v280 = vld [vmem:[%s278 + $0x8] sm:$0xff]
        %v281 = vld [vmem:[%s278 + $0x18] sm:$0xff]
        %v282 = vld [vmem:[%s278 + $0x20] sm:$0xff]
        %v283 = vld [vmem:[%s278 + $0x30] sm:$0xff]
        %v284 = vld [vmem:[%s278 + $0x38] sm:$0xff]
        %v285 = vld [vmem:[%s278 + $0x48] sm:$0xff]
        %v286 = vld [vmem:[%s278 + $0x50] sm:$0xff]
        %v287 = vld [vmem:[%s278 + $0x60] sm:$0xff]
        %v288 = vld [vmem:[%s278 + $0x68] sm:$0xff]
        %v289 = vld [vmem:[%s278 + $0x78] sm:$0xff]
        %v290 = vld [vmem:[%s278 + $0x80] sm:$0xff]
        %v291 = vld [vmem:[%s278 + $0x90] sm:$0xff]
        %v292 = vld [vmem:[%s278 + $0x98] sm:$0xff]
        %v293 = vld [vmem:[%s278 + $0xa8] sm:$0xff]
        %v294 = vld [vmem:[%s278 + $0xb0] sm:$0xff]
        %v295 = vld [vmem:[%s278 + $0x1] sm:$0xff]
        %v296 = vld [vmem:[%s278 + $0x9] sm:$0xff]
        %v297 = vld [vmem:[%s278 + $0x19] sm:$0xff]
        %v298 = vld [vmem:[%s278 + $0x21] sm:$0xff]
        %v299 = vld [vmem:[%s278 + $0x31] sm:$0xff]
        %v300 = vld [vmem:[%s278 + $0x39] sm:$0xff]
        %v301 = vld [vmem:[%s278 + $0x49] sm:$0xff]
        %v302 = vld [vmem:[%s278 + $0x51] sm:$0xff]
        %v303 = vld [vmem:[%s278 + $0x61] sm:$0xff]
        %v304 = vld [vmem:[%s278 + $0x69] sm:$0xff]
        %v305 = vld [vmem:[%s278 + $0x79] sm:$0xff]
        %v306 = vld [vmem:[%s278 + $0x81] sm:$0xff]
        %v307 = vld [vmem:[%s278 + $0x91] sm:$0xff]
        %v308 = vld [vmem:[%s278 + $0x99] sm:$0xff]
        %v309 = vld [vmem:[%s278 + $0xa9] sm:$0xff]
        %v310 = vld [vmem:[%s278 + $0xb1] sm:$0xff]
        %v311 = vld [vmem:[%s278 + $0x2] sm:$0xff]
        %v312 = vld [vmem:[%s278 + $0xa] sm:$0xff]
        %v313 = vld [vmem:[%s278 + $0x1a] sm:$0xff]
        %v314 = vld [vmem:[%s278 + $0x22] sm:$0xff]
        %v315 = vld [vmem:[%s278 + $0x32] sm:$0xff]
        %v316 = vld [vmem:[%s278 + $0x3a] sm:$0xff]
        %v317 = vld [vmem:[%s278 + $0x4a] sm:$0xff]
        %v318 = vld [vmem:[%s278 + $0x52] sm:$0xff]
        %v319 = vld [vmem:[%s278 + $0x62] sm:$0xff]
        %v320 = vld [vmem:[%s278 + $0x6a] sm:$0xff]
        %v321 = vld [vmem:[%s278 + $0x7a] sm:$0xff]
        %v322 = vld [vmem:[%s278 + $0x82] sm:$0xff]
        %v323 = vld [vmem:[%s278 + $0x92] sm:$0xff]
        %v324 = vld [vmem:[%s278 + $0x9a] sm:$0xff]
        %v325 = vld [vmem:[%s278 + $0xaa] sm:$0xff]
        %v326 = vld [vmem:[%s278 + $0xb2] sm:$0xff]
        %v327 = vld [vmem:[%s278 + $0x3] sm:$0xff]
        %v328 = vld [vmem:[%s278 + $0xb] sm:$0xff]
        %v329 = vld [vmem:[%s278 + $0x1b] sm:$0xff]
        %v330 = vld [vmem:[%s278 + $0x23] sm:$0xff]
        %v331 = vld [vmem:[%s278 + $0x33] sm:$0xff]
        %v332 = vld [vmem:[%s278 + $0x3b] sm:$0xff]
        %v333 = vld [vmem:[%s278 + $0x4b] sm:$0xff]
        %v334 = vld [vmem:[%s278 + $0x53] sm:$0xff]
        %v335 = vld [vmem:[%s278 + $0x63] sm:$0xff]
        %v336 = vld [vmem:[%s278 + $0x6b] sm:$0xff]
        %v337 = vld [vmem:[%s278 + $0x7b] sm:$0xff]
        %v338 = vld [vmem:[%s278 + $0x83] sm:$0xff]
        %v339 = vld [vmem:[%s278 + $0x93] sm:$0xff]
        %v340 = vld [vmem:[%s278 + $0x9b] sm:$0xff]
        %v341 = vld [vmem:[%s278 + $0xab] sm:$0xff]
        %v342 = vld [vmem:[%s278 + $0xb3] sm:$0xff]
        %v343 = vld [vmem:[%s278 + $0x4] sm:$0xff]
        %v344 = vld [vmem:[%s278 + $0xc] sm:$0xff]
        %v345 = vld [vmem:[%s278 + $0x1c] sm:$0xff]
        %v346 = vld [vmem:[%s278 + $0x24] sm:$0xff]
        %v347 = vld [vmem:[%s278 + $0x34] sm:$0xff]
        %v348 = vld [vmem:[%s278 + $0x3c] sm:$0xff]
        %v349 = vld [vmem:[%s278 + $0x4c] sm:$0xff]
        %v350 = vld [vmem:[%s278 + $0x54] sm:$0xff]
        %v351 = vld [vmem:[%s278 + $0x64] sm:$0xff]
        %v352 = vld [vmem:[%s278 + $0x6c] sm:$0xff]
        %v353 = vld [vmem:[%s278 + $0x7c] sm:$0xff]
        %v354 = vld [vmem:[%s278 + $0x84] sm:$0xff]
        %v355 = vld [vmem:[%s278 + $0x94] sm:$0xff]
        %v356 = vld [vmem:[%s278 + $0x9c] sm:$0xff]
        %v357 = vld [vmem:[%s278 + $0xac] sm:$0xff]
        %v358 = vld [vmem:[%s278 + $0xb4] sm:$0xff]
        %s359 = scalar_lea.vmem %s196, 48
        %v360 = vld [vmem:[%s359] sm:$0xff]
        %v361 = vld [vmem:[%s359 + $0x8] sm:$0xff]
        %v362 = vld [vmem:[%s359 + $0x18] sm:$0xff]
        %v363 = vld [vmem:[%s359 + $0x20] sm:$0xff]
        %v364 = vld [vmem:[%s359 + $0x30] sm:$0xff]
        %v365 = vld [vmem:[%s359 + $0x38] sm:$0xff]
        %v366 = vld [vmem:[%s359 + $0x48] sm:$0xff]
        %v367 = vld [vmem:[%s359 + $0x50] sm:$0xff]
        %v368 = vld [vmem:[%s359 + $0x60] sm:$0xff]
        %v369 = vld [vmem:[%s359 + $0x68] sm:$0xff]
        %v370 = vld [vmem:[%s359 + $0x78] sm:$0xff]
        %v371 = vld [vmem:[%s359 + $0x80] sm:$0xff]
        %v372 = vld [vmem:[%s359 + $0x90] sm:$0xff]
        %v373 = vld [vmem:[%s359 + $0x98] sm:$0xff]
        %v374 = vld [vmem:[%s359 + $0xa8] sm:$0xff]
        %v375 = vld [vmem:[%s359 + $0xb0] sm:$0xff]
        %v376 = vld [vmem:[%s359 + $0x1] sm:$0xff]
        %v377 = vld [vmem:[%s359 + $0x9] sm:$0xff]
        %v378 = vld [vmem:[%s359 + $0x19] sm:$0xff]
        %v379 = vld [vmem:[%s359 + $0x21] sm:$0xff]
        %v380 = vld [vmem:[%s359 + $0x31] sm:$0xff]
        %v381 = vld [vmem:[%s359 + $0x39] sm:$0xff]
        %v382 = vld [vmem:[%s359 + $0x49] sm:$0xff]
        %v383 = vld [vmem:[%s359 + $0x51] sm:$0xff]
        %v384 = vld [vmem:[%s359 + $0x61] sm:$0xff]
        %v385 = vld [vmem:[%s359 + $0x69] sm:$0xff]
        %v386 = vld [vmem:[%s359 + $0x79] sm:$0xff]
        %v387 = vld [vmem:[%s359 + $0x81] sm:$0xff]
        %v388 = vld [vmem:[%s359 + $0x91] sm:$0xff]
        %v389 = vld [vmem:[%s359 + $0x99] sm:$0xff]
        %v390 = vld [vmem:[%s359 + $0xa9] sm:$0xff]
        %v391 = vld [vmem:[%s359 + $0xb1] sm:$0xff]
        %v392 = vld [vmem:[%s359 + $0x2] sm:$0xff]
        %v393 = vld [vmem:[%s359 + $0xa] sm:$0xff]
        %v394 = vld [vmem:[%s359 + $0x1a] sm:$0xff]
        %v395 = vld [vmem:[%s359 + $0x22] sm:$0xff]
        %v396 = vld [vmem:[%s359 + $0x32] sm:$0xff]
        %v397 = vld [vmem:[%s359 + $0x3a] sm:$0xff]
        %v398 = vld [vmem:[%s359 + $0x4a] sm:$0xff]
        %v399 = vld [vmem:[%s359 + $0x52] sm:$0xff]
        %v400 = vld [vmem:[%s359 + $0x62] sm:$0xff]
        %v401 = vld [vmem:[%s359 + $0x6a] sm:$0xff]
        %v402 = vld [vmem:[%s359 + $0x7a] sm:$0xff]
        %v403 = vld [vmem:[%s359 + $0x82] sm:$0xff]
        %v404 = vld [vmem:[%s359 + $0x92] sm:$0xff]
        %v405 = vld [vmem:[%s359 + $0x9a] sm:$0xff]
        %v406 = vld [vmem:[%s359 + $0xaa] sm:$0xff]
        %v407 = vld [vmem:[%s359 + $0xb2] sm:$0xff]
        %v408 = vld [vmem:[%s359 + $0x3] sm:$0xff]
        %v409 = vld [vmem:[%s359 + $0xb] sm:$0xff]
        %v410 = vld [vmem:[%s359 + $0x1b] sm:$0xff]
        %v411 = vld [vmem:[%s359 + $0x23] sm:$0xff]
        %v412 = vld [vmem:[%s359 + $0x33] sm:$0xff]
        %v413 = vld [vmem:[%s359 + $0x3b] sm:$0xff]
        %v414 = vld [vmem:[%s359 + $0x4b] sm:$0xff]
        %v415 = vld [vmem:[%s359 + $0x53] sm:$0xff]
        %v416 = vld [vmem:[%s359 + $0x63] sm:$0xff]
        %v417 = vld [vmem:[%s359 + $0x6b] sm:$0xff]
        %v418 = vld [vmem:[%s359 + $0x7b] sm:$0xff]
        %v419 = vld [vmem:[%s359 + $0x83] sm:$0xff]
        %v420 = vld [vmem:[%s359 + $0x93] sm:$0xff]
        %v421 = vld [vmem:[%s359 + $0x9b] sm:$0xff]
        %v422 = vld [vmem:[%s359 + $0xab] sm:$0xff]
        %v423 = vld [vmem:[%s359 + $0xb3] sm:$0xff]
        %v424 = vld [vmem:[%s359 + $0x4] sm:$0xff]
        %v425 = vld [vmem:[%s359 + $0xc] sm:$0xff]
        %v426 = vld [vmem:[%s359 + $0x1c] sm:$0xff]
        %v427 = vld [vmem:[%s359 + $0x24] sm:$0xff]
        %v428 = vld [vmem:[%s359 + $0x34] sm:$0xff]
        %v429 = vld [vmem:[%s359 + $0x3c] sm:$0xff]
        %v430 = vld [vmem:[%s359 + $0x4c] sm:$0xff]
        %v431 = vld [vmem:[%s359 + $0x54] sm:$0xff]
        %v432 = vld [vmem:[%s359 + $0x64] sm:$0xff]
        %v433 = vld [vmem:[%s359 + $0x6c] sm:$0xff]
        %v434 = vld [vmem:[%s359 + $0x7c] sm:$0xff]
        %v435 = vld [vmem:[%s359 + $0x84] sm:$0xff]
        %v436 = vld [vmem:[%s359 + $0x94] sm:$0xff]
        %v437 = vld [vmem:[%s359 + $0x9c] sm:$0xff]
        %v438 = vld [vmem:[%s359 + $0xac] sm:$0xff]
        %v439 = vld [vmem:[%s359 + $0xb4] sm:$0xff]
        %s440 = scalar_lea.vmem %s196, 72
        %v441 = vld [vmem:[%s440] sm:$0xff]
        %v442 = vld [vmem:[%s440 + $0x8] sm:$0xff]
        %v443 = vld [vmem:[%s440 + $0x18] sm:$0xff]
        %v444 = vld [vmem:[%s440 + $0x20] sm:$0xff]
        %v445 = vld [vmem:[%s440 + $0x30] sm:$0xff]
        %v446 = vld [vmem:[%s440 + $0x38] sm:$0xff]
        %v447 = vld [vmem:[%s440 + $0x48] sm:$0xff]
        %v448 = vld [vmem:[%s440 + $0x50] sm:$0xff]
        %v449 = vld [vmem:[%s440 + $0x60] sm:$0xff]
        %v450 = vld [vmem:[%s440 + $0x68] sm:$0xff]
        %v451 = vld [vmem:[%s440 + $0x78] sm:$0xff]
        %v452 = vld [vmem:[%s440 + $0x80] sm:$0xff]
        %v453 = vld [vmem:[%s440 + $0x90] sm:$0xff]
        %v454 = vld [vmem:[%s440 + $0x98] sm:$0xff]
        %v455 = vld [vmem:[%s440 + $0xa8] sm:$0xff]
        %v456 = vld [vmem:[%s440 + $0xb0] sm:$0xff]
        %v457 = vld [vmem:[%s440 + $0x1] sm:$0xff]
        %v458 = vld [vmem:[%s440 + $0x9] sm:$0xff]
        %v459 = vld [vmem:[%s440 + $0x19] sm:$0xff]
        %v460 = vld [vmem:[%s440 + $0x21] sm:$0xff]
        %v461 = vld [vmem:[%s440 + $0x31] sm:$0xff]
        %v462 = vld [vmem:[%s440 + $0x39] sm:$0xff]
        %v463 = vld [vmem:[%s440 + $0x49] sm:$0xff]
        %v464 = vld [vmem:[%s440 + $0x51] sm:$0xff]
        %v465 = vld [vmem:[%s440 + $0x61] sm:$0xff]
        %v466 = vld [vmem:[%s440 + $0x69] sm:$0xff]
        %v467 = vld [vmem:[%s440 + $0x79] sm:$0xff]
        %v468 = vld [vmem:[%s440 + $0x81] sm:$0xff]
        %v469 = vld [vmem:[%s440 + $0x91] sm:$0xff]
        %v470 = vld [vmem:[%s440 + $0x99] sm:$0xff]
        %v471 = vld [vmem:[%s440 + $0xa9] sm:$0xff]
        %v472 = vld [vmem:[%s440 + $0xb1] sm:$0xff]
        %v473 = vld [vmem:[%s440 + $0x2] sm:$0xff]
        %v474 = vld [vmem:[%s440 + $0xa] sm:$0xff]
        %v475 = vld [vmem:[%s440 + $0x1a] sm:$0xff]
        %v476 = vld [vmem:[%s440 + $0x22] sm:$0xff]
        %v477 = vld [vmem:[%s440 + $0x32] sm:$0xff]
        %v478 = vld [vmem:[%s440 + $0x3a] sm:$0xff]
        %v479 = vld [vmem:[%s440 + $0x4a] sm:$0xff]
        %v480 = vld [vmem:[%s440 + $0x52] sm:$0xff]
        %v481 = vld [vmem:[%s440 + $0x62] sm:$0xff]
        %v482 = vld [vmem:[%s440 + $0x6a] sm:$0xff]
        %v483 = vld [vmem:[%s440 + $0x7a] sm:$0xff]
        %v484 = vld [vmem:[%s440 + $0x82] sm:$0xff]
        %v485 = vld [vmem:[%s440 + $0x92] sm:$0xff]
        %v486 = vld [vmem:[%s440 + $0x9a] sm:$0xff]
        %v487 = vld [vmem:[%s440 + $0xaa] sm:$0xff]
        %v488 = vld [vmem:[%s440 + $0xb2] sm:$0xff]
        %v489 = vld [vmem:[%s440 + $0x3] sm:$0xff]
        %v490 = vld [vmem:[%s440 + $0xb] sm:$0xff]
        %v491 = vld [vmem:[%s440 + $0x1b] sm:$0xff]
        %v492 = vld [vmem:[%s440 + $0x23] sm:$0xff]
        %v493 = vld [vmem:[%s440 + $0x33] sm:$0xff]
        %v494 = vld [vmem:[%s440 + $0x3b] sm:$0xff]
        %v495 = vld [vmem:[%s440 + $0x4b] sm:$0xff]
        %v496 = vld [vmem:[%s440 + $0x53] sm:$0xff]
        %v497 = vld [vmem:[%s440 + $0x63] sm:$0xff]
        %v498 = vld [vmem:[%s440 + $0x6b] sm:$0xff]
        %v499 = vld [vmem:[%s440 + $0x7b] sm:$0xff]
        %v500 = vld [vmem:[%s440 + $0x83] sm:$0xff]
        %v501 = vld [vmem:[%s440 + $0x93] sm:$0xff]
        %v502 = vld [vmem:[%s440 + $0x9b] sm:$0xff]
        %v503 = vld [vmem:[%s440 + $0xab] sm:$0xff]
        %v504 = vld [vmem:[%s440 + $0xb3] sm:$0xff]
        %v505 = vld [vmem:[%s440 + $0x4] sm:$0xff]
        %v506 = vld [vmem:[%s440 + $0xc] sm:$0xff]
        %v507 = vld [vmem:[%s440 + $0x1c] sm:$0xff]
        %v508 = vld [vmem:[%s440 + $0x24] sm:$0xff]
        %v509 = vld [vmem:[%s440 + $0x34] sm:$0xff]
        %v510 = vld [vmem:[%s440 + $0x3c] sm:$0xff]
        %v511 = vld [vmem:[%s440 + $0x4c] sm:$0xff]
        %v512 = vld [vmem:[%s440 + $0x54] sm:$0xff]
        %v513 = vld [vmem:[%s440 + $0x64] sm:$0xff]
        %v514 = vld [vmem:[%s440 + $0x6c] sm:$0xff]
        %v515 = vld [vmem:[%s440 + $0x7c] sm:$0xff]
        %v516 = vld [vmem:[%s440 + $0x84] sm:$0xff]
        %v517 = vld [vmem:[%s440 + $0x94] sm:$0xff]
        %v518 = vld [vmem:[%s440 + $0x9c] sm:$0xff]
        %v519 = vld [vmem:[%s440 + $0xac] sm:$0xff]
        %v520 = vld [vmem:[%s440 + $0xb4] sm:$0xff]
        %s521 = scalar_lea.vmem %s196, 96
        %v522 = vld [vmem:[%s521] sm:$0xff]
        %v523 = vld [vmem:[%s521 + $0x8] sm:$0xff]
        %v524 = vld [vmem:[%s521 + $0x18] sm:$0xff]
        %v525 = vld [vmem:[%s521 + $0x20] sm:$0xff]
        %v526 = vld [vmem:[%s521 + $0x30] sm:$0xff]
        %v527 = vld [vmem:[%s521 + $0x38] sm:$0xff]
        %v528 = vld [vmem:[%s521 + $0x48] sm:$0xff]
        %v529 = vld [vmem:[%s521 + $0x50] sm:$0xff]
        %v530 = vld [vmem:[%s521 + $0x60] sm:$0xff]
        %v531 = vld [vmem:[%s521 + $0x68] sm:$0xff]
        %v532 = vld [vmem:[%s521 + $0x78] sm:$0xff]
        %v533 = vld [vmem:[%s521 + $0x80] sm:$0xff]
        %v534 = vld [vmem:[%s521 + $0x90] sm:$0xff]
        %v535 = vld [vmem:[%s521 + $0x98] sm:$0xff]
        %v536 = vld [vmem:[%s521 + $0xa8] sm:$0xff]
        %v537 = vld [vmem:[%s521 + $0xb0] sm:$0xff]
        %v538 = vld [vmem:[%s521 + $0x1] sm:$0xff]
        %v539 = vld [vmem:[%s521 + $0x9] sm:$0xff]
        %v540 = vld [vmem:[%s521 + $0x19] sm:$0xff]
        %v541 = vld [vmem:[%s521 + $0x21] sm:$0xff]
        %v542 = vld [vmem:[%s521 + $0x31] sm:$0xff]
        %v543 = vld [vmem:[%s521 + $0x39] sm:$0xff]
        %v544 = vld [vmem:[%s521 + $0x49] sm:$0xff]
        %v545 = vld [vmem:[%s521 + $0x51] sm:$0xff]
        %v546 = vld [vmem:[%s521 + $0x61] sm:$0xff]
        %v547 = vld [vmem:[%s521 + $0x69] sm:$0xff]
        %v548 = vld [vmem:[%s521 + $0x79] sm:$0xff]
        %v549 = vld [vmem:[%s521 + $0x81] sm:$0xff]
        %v550 = vld [vmem:[%s521 + $0x91] sm:$0xff]
        %v551 = vld [vmem:[%s521 + $0x99] sm:$0xff]
        %v552 = vld [vmem:[%s521 + $0xa9] sm:$0xff]
        %v553 = vld [vmem:[%s521 + $0xb1] sm:$0xff]
        %v554 = vld [vmem:[%s521 + $0x2] sm:$0xff]
        %v555 = vld [vmem:[%s521 + $0xa] sm:$0xff]
        %v556 = vld [vmem:[%s521 + $0x1a] sm:$0xff]
        %v557 = vld [vmem:[%s521 + $0x22] sm:$0xff]
        %v558 = vld [vmem:[%s521 + $0x32] sm:$0xff]
        %v559 = vld [vmem:[%s521 + $0x3a] sm:$0xff]
        %v560 = vld [vmem:[%s521 + $0x4a] sm:$0xff]
        %v561 = vld [vmem:[%s521 + $0x52] sm:$0xff]
        %v562 = vld [vmem:[%s521 + $0x62] sm:$0xff]
        %v563 = vld [vmem:[%s521 + $0x6a] sm:$0xff]
        %v564 = vld [vmem:[%s521 + $0x7a] sm:$0xff]
        %v565 = vld [vmem:[%s521 + $0x82] sm:$0xff]
        %v566 = vld [vmem:[%s521 + $0x92] sm:$0xff]
        %v567 = vld [vmem:[%s521 + $0x9a] sm:$0xff]
        %v568 = vld [vmem:[%s521 + $0xaa] sm:$0xff]
        %v569 = vld [vmem:[%s521 + $0xb2] sm:$0xff]
        %v570 = vld [vmem:[%s521 + $0x3] sm:$0xff]
        %v571 = vld [vmem:[%s521 + $0xb] sm:$0xff]
        %v572 = vld [vmem:[%s521 + $0x1b] sm:$0xff]
        %v573 = vld [vmem:[%s521 + $0x23] sm:$0xff]
        %v574 = vld [vmem:[%s521 + $0x33] sm:$0xff]
        %v575 = vld [vmem:[%s521 + $0x3b] sm:$0xff]
        %v576 = vld [vmem:[%s521 + $0x4b] sm:$0xff]
        %v577 = vld [vmem:[%s521 + $0x53] sm:$0xff]
        %v578 = vld [vmem:[%s521 + $0x63] sm:$0xff]
        %v579 = vld [vmem:[%s521 + $0x6b] sm:$0xff]
        %v580 = vld [vmem:[%s521 + $0x7b] sm:$0xff]
        %v581 = vld [vmem:[%s521 + $0x83] sm:$0xff]
        %v582 = vld [vmem:[%s521 + $0x93] sm:$0xff]
        %v583 = vld [vmem:[%s521 + $0x9b] sm:$0xff]
        %v584 = vld [vmem:[%s521 + $0xab] sm:$0xff]
        %v585 = vld [vmem:[%s521 + $0xb3] sm:$0xff]
        %v586 = vld [vmem:[%s521 + $0x4] sm:$0xff]
        %v587 = vld [vmem:[%s521 + $0xc] sm:$0xff]
        %v588 = vld [vmem:[%s521 + $0x1c] sm:$0xff]
        %v589 = vld [vmem:[%s521 + $0x24] sm:$0xff]
        %v590 = vld [vmem:[%s521 + $0x34] sm:$0xff]
        %v591 = vld [vmem:[%s521 + $0x3c] sm:$0xff]
        %v592 = vld [vmem:[%s521 + $0x4c] sm:$0xff]
        %v593 = vld [vmem:[%s521 + $0x54] sm:$0xff]
        %v594 = vld [vmem:[%s521 + $0x64] sm:$0xff]
        %v595 = vld [vmem:[%s521 + $0x6c] sm:$0xff]
        %v596 = vld [vmem:[%s521 + $0x7c] sm:$0xff]
        %v597 = vld [vmem:[%s521 + $0x84] sm:$0xff]
        %v598 = vld [vmem:[%s521 + $0x94] sm:$0xff]
        %v599 = vld [vmem:[%s521 + $0x9c] sm:$0xff]
        %v600 = vld [vmem:[%s521 + $0xac] sm:$0xff]
        %v601 = vld [vmem:[%s521 + $0xb4] sm:$0xff]
        %618 = vrot.lane.b32.xlu0 %v214, 4
        %v619 = vpop.permute.xlu0 %618
        %620 = vrot.lane.b32.xlu0 %v215, 4
        %v621 = vpop.permute.xlu0 %620
        %622 = vrot.lane.b32.xlu0 %v216, 4
        %v623 = vpop.permute.xlu0 %622
        %624 = vrot.lane.b32.xlu0 %v217, 4
        %v625 = vpop.permute.xlu0 %624
        %626 = vrot.lane.b32.xlu0 %v218, 4
        %v627 = vpop.permute.xlu0 %626
        %628 = vrot.lane.b32.xlu0 %v219, 4
        %v629 = vpop.permute.xlu0 %628
        %630 = vrot.lane.b32.xlu0 %v220, 4
        %v631 = vpop.permute.xlu0 %630
        %632 = vrot.lane.b32.xlu0 %v221, 4
        %v633 = vpop.permute.xlu0 %632
        %634 = vrot.lane.b32.xlu0 %v222, 4
        %v635 = vpop.permute.xlu0 %634
        %636 = vrot.lane.b32.xlu0 %v223, 4
        %v637 = vpop.permute.xlu0 %636
        %638 = vrot.lane.b32.xlu0 %v224, 4
        %v639 = vpop.permute.xlu0 %638
        %640 = vrot.lane.b32.xlu0 %v225, 4
        %v641 = vpop.permute.xlu0 %640
        %642 = vrot.lane.b32.xlu0 %v226, 4
        %v643 = vpop.permute.xlu0 %642
        %644 = vrot.lane.b32.xlu0 %v227, 4
        %v645 = vpop.permute.xlu0 %644
        %646 = vrot.lane.b32.xlu0 %v228, 4
        %v647 = vpop.permute.xlu0 %646
        %648 = vrot.lane.b32.xlu0 %v229, 4
        %v649 = vpop.permute.xlu0 %648
        %682 = vrot.lane.b32.xlu0 %v230, 8
        %v683 = vpop.permute.xlu0 %682
        %684 = vrot.lane.b32.xlu0 %v231, 8
        %v685 = vpop.permute.xlu0 %684
        %686 = vrot.lane.b32.xlu0 %v232, 8
        %v687 = vpop.permute.xlu0 %686
        %688 = vrot.lane.b32.xlu0 %v233, 8
        %v689 = vpop.permute.xlu0 %688
        %690 = vrot.lane.b32.xlu0 %v234, 8
        %v691 = vpop.permute.xlu0 %690
        %692 = vrot.lane.b32.xlu0 %v235, 8
        %v693 = vpop.permute.xlu0 %692
        %694 = vrot.lane.b32.xlu0 %v236, 8
        %v695 = vpop.permute.xlu0 %694
        %696 = vrot.lane.b32.xlu0 %v237, 8
        %v697 = vpop.permute.xlu0 %696
        %698 = vrot.lane.b32.xlu0 %v238, 8
        %v699 = vpop.permute.xlu0 %698
        %700 = vrot.lane.b32.xlu0 %v239, 8
        %v701 = vpop.permute.xlu0 %700
        %702 = vrot.lane.b32.xlu0 %v240, 8
        %v703 = vpop.permute.xlu0 %702
        %704 = vrot.lane.b32.xlu0 %v241, 8
        %v705 = vpop.permute.xlu0 %704
        %706 = vrot.lane.b32.xlu0 %v242, 8
        %v707 = vpop.permute.xlu0 %706
        %708 = vrot.lane.b32.xlu0 %v243, 8
        %v709 = vpop.permute.xlu0 %708
        %710 = vrot.lane.b32.xlu0 %v244, 8
        %v711 = vpop.permute.xlu0 %710
        %712 = vrot.lane.b32.xlu0 %v245, 8
        %v713 = vpop.permute.xlu0 %712
        %746 = vrot.lane.b32.xlu0 %v246, 12
        %v747 = vpop.permute.xlu0 %746
        %748 = vrot.lane.b32.xlu0 %v247, 12
        %v749 = vpop.permute.xlu0 %748
        %750 = vrot.lane.b32.xlu0 %v248, 12
        %v751 = vpop.permute.xlu0 %750
        %752 = vrot.lane.b32.xlu0 %v249, 12
        %v753 = vpop.permute.xlu0 %752
        %754 = vrot.lane.b32.xlu0 %v250, 12
        %v755 = vpop.permute.xlu0 %754
        %756 = vrot.lane.b32.xlu0 %v251, 12
        %v757 = vpop.permute.xlu0 %756
        %758 = vrot.lane.b32.xlu0 %v252, 12
        %v759 = vpop.permute.xlu0 %758
        %760 = vrot.lane.b32.xlu0 %v253, 12
        %v761 = vpop.permute.xlu0 %760
        %762 = vrot.lane.b32.xlu0 %v254, 12
        %v763 = vpop.permute.xlu0 %762
        %764 = vrot.lane.b32.xlu0 %v255, 12
        %v765 = vpop.permute.xlu0 %764
        %766 = vrot.lane.b32.xlu0 %v256, 12
        %v767 = vpop.permute.xlu0 %766
        %768 = vrot.lane.b32.xlu0 %v257, 12
        %v769 = vpop.permute.xlu0 %768
        %770 = vrot.lane.b32.xlu0 %v258, 12
        %v771 = vpop.permute.xlu0 %770
        %772 = vrot.lane.b32.xlu0 %v259, 12
        %v773 = vpop.permute.xlu0 %772
        %774 = vrot.lane.b32.xlu0 %v260, 12
        %v775 = vpop.permute.xlu0 %774
        %776 = vrot.lane.b32.xlu0 %v261, 12
        %v777 = vpop.permute.xlu0 %776
        %810 = vrot.lane.b32.xlu0 %v262, 16
        %v811 = vpop.permute.xlu0 %810
        %812 = vrot.lane.b32.xlu0 %v263, 16
        %v813 = vpop.permute.xlu0 %812
        %814 = vrot.lane.b32.xlu0 %v264, 16
        %v815 = vpop.permute.xlu0 %814
        %816 = vrot.lane.b32.xlu0 %v265, 16
        %v817 = vpop.permute.xlu0 %816
        %818 = vrot.lane.b32.xlu0 %v266, 16
        %v819 = vpop.permute.xlu0 %818
        %820 = vrot.lane.b32.xlu0 %v267, 16
        %v821 = vpop.permute.xlu0 %820
        %822 = vrot.lane.b32.xlu0 %v268, 16
        %v823 = vpop.permute.xlu0 %822
        %824 = vrot.lane.b32.xlu0 %v269, 16
        %v825 = vpop.permute.xlu0 %824
        %826 = vrot.lane.b32.xlu0 %v270, 16
        %v827 = vpop.permute.xlu0 %826
        %828 = vrot.lane.b32.xlu0 %v271, 16
        %v829 = vpop.permute.xlu0 %828
        %830 = vrot.lane.b32.xlu0 %v272, 16
        %v831 = vpop.permute.xlu0 %830
        %832 = vrot.lane.b32.xlu0 %v273, 16
        %v833 = vpop.permute.xlu0 %832
        %834 = vrot.lane.b32.xlu0 %v274, 16
        %v835 = vpop.permute.xlu0 %834
        %836 = vrot.lane.b32.xlu0 %v275, 16
        %v837 = vpop.permute.xlu0 %836
        %838 = vrot.lane.b32.xlu0 %v276, 16
        %v839 = vpop.permute.xlu0 %838
        %840 = vrot.lane.b32.xlu0 %v277, 16
        %v841 = vpop.permute.xlu0 %840
        %874 = vrot.lane.b32.xlu0 %v279, 20
        %v875 = vpop.permute.xlu0 %874
        %876 = vrot.lane.b32.xlu0 %v280, 20
        %v877 = vpop.permute.xlu0 %876
        %878 = vrot.lane.b32.xlu0 %v281, 20
        %v879 = vpop.permute.xlu0 %878
        %880 = vrot.lane.b32.xlu0 %v282, 20
        %v881 = vpop.permute.xlu0 %880
        %882 = vrot.lane.b32.xlu0 %v283, 20
        %v883 = vpop.permute.xlu0 %882
        %884 = vrot.lane.b32.xlu0 %v284, 20
        %v885 = vpop.permute.xlu0 %884
        %886 = vrot.lane.b32.xlu0 %v285, 20
        %v887 = vpop.permute.xlu0 %886
        %888 = vrot.lane.b32.xlu0 %v286, 20
        %v889 = vpop.permute.xlu0 %888
        %890 = vrot.lane.b32.xlu0 %v287, 20
        %v891 = vpop.permute.xlu0 %890
        %892 = vrot.lane.b32.xlu0 %v288, 20
        %v893 = vpop.permute.xlu0 %892
        %894 = vrot.lane.b32.xlu0 %v289, 20
        %v895 = vpop.permute.xlu0 %894
        %896 = vrot.lane.b32.xlu0 %v290, 20
        %v897 = vpop.permute.xlu0 %896
        %898 = vrot.lane.b32.xlu0 %v291, 20
        %v899 = vpop.permute.xlu0 %898
        %900 = vrot.lane.b32.xlu0 %v292, 20
        %v901 = vpop.permute.xlu0 %900
        %902 = vrot.lane.b32.xlu0 %v293, 20
        %v903 = vpop.permute.xlu0 %902
        %904 = vrot.lane.b32.xlu0 %v294, 20
        %v905 = vpop.permute.xlu0 %904
        %938 = vrot.lane.b32.xlu0 %v295, 24
        %v939 = vpop.permute.xlu0 %938
        %940 = vrot.lane.b32.xlu0 %v296, 24
        %v941 = vpop.permute.xlu0 %940
        %942 = vrot.lane.b32.xlu0 %v297, 24
        %v943 = vpop.permute.xlu0 %942
        %944 = vrot.lane.b32.xlu0 %v298, 24
        %v945 = vpop.permute.xlu0 %944
        %946 = vrot.lane.b32.xlu0 %v299, 24
        %v947 = vpop.permute.xlu0 %946
        %948 = vrot.lane.b32.xlu0 %v300, 24
        %v949 = vpop.permute.xlu0 %948
        %950 = vrot.lane.b32.xlu0 %v301, 24
        %v951 = vpop.permute.xlu0 %950
        %952 = vrot.lane.b32.xlu0 %v302, 24
        %v953 = vpop.permute.xlu0 %952
        %954 = vrot.lane.b32.xlu0 %v303, 24
        %v955 = vpop.permute.xlu0 %954
        %956 = vrot.lane.b32.xlu0 %v304, 24
        %v957 = vpop.permute.xlu0 %956
        %958 = vrot.lane.b32.xlu0 %v305, 24
        %v959 = vpop.permute.xlu0 %958
        %960 = vrot.lane.b32.xlu0 %v306, 24
        %v961 = vpop.permute.xlu0 %960
        %962 = vrot.lane.b32.xlu0 %v307, 24
        %v963 = vpop.permute.xlu0 %962
        %964 = vrot.lane.b32.xlu0 %v308, 24
        %v965 = vpop.permute.xlu0 %964
        %966 = vrot.lane.b32.xlu0 %v309, 24
        %v967 = vpop.permute.xlu0 %966
        %968 = vrot.lane.b32.xlu0 %v310, 24
        %v969 = vpop.permute.xlu0 %968
        %1002 = vrot.lane.b32.xlu0 %v311, 28
        %v1003 = vpop.permute.xlu0 %1002
        %1004 = vrot.lane.b32.xlu0 %v312, 28
        %v1005 = vpop.permute.xlu0 %1004
        %1006 = vrot.lane.b32.xlu0 %v313, 28
        %v1007 = vpop.permute.xlu0 %1006
        %1008 = vrot.lane.b32.xlu0 %v314, 28
        %v1009 = vpop.permute.xlu0 %1008
        %1010 = vrot.lane.b32.xlu0 %v315, 28
        %v1011 = vpop.permute.xlu0 %1010
        %1012 = vrot.lane.b32.xlu0 %v316, 28
        %v1013 = vpop.permute.xlu0 %1012
        %1014 = vrot.lane.b32.xlu0 %v317, 28
        %v1015 = vpop.permute.xlu0 %1014
        %1016 = vrot.lane.b32.xlu0 %v318, 28
        %v1017 = vpop.permute.xlu0 %1016
        %1018 = vrot.lane.b32.xlu0 %v319, 28
        %v1019 = vpop.permute.xlu0 %1018
        %1020 = vrot.lane.b32.xlu0 %v320, 28
        %v1021 = vpop.permute.xlu0 %1020
        %1022 = vrot.lane.b32.xlu0 %v321, 28
        %v1023 = vpop.permute.xlu0 %1022
        %1024 = vrot.lane.b32.xlu0 %v322, 28
        %v1025 = vpop.permute.xlu0 %1024
        %1026 = vrot.lane.b32.xlu0 %v323, 28
        %v1027 = vpop.permute.xlu0 %1026
        %1028 = vrot.lane.b32.xlu0 %v324, 28
        %v1029 = vpop.permute.xlu0 %1028
        %1030 = vrot.lane.b32.xlu0 %v325, 28
        %v1031 = vpop.permute.xlu0 %1030
        %1032 = vrot.lane.b32.xlu0 %v326, 28
        %v1033 = vpop.permute.xlu0 %1032
        %1066 = vrot.lane.b32.xlu0 %v327, 32
        %v1067 = vpop.permute.xlu0 %1066
        %1068 = vrot.lane.b32.xlu0 %v328, 32
        %v1069 = vpop.permute.xlu0 %1068
        %1070 = vrot.lane.b32.xlu0 %v329, 32
        %v1071 = vpop.permute.xlu0 %1070
        %1072 = vrot.lane.b32.xlu0 %v330, 32
        %v1073 = vpop.permute.xlu0 %1072
        %1074 = vrot.lane.b32.xlu0 %v331, 32
        %v1075 = vpop.permute.xlu0 %1074
        %1076 = vrot.lane.b32.xlu0 %v332, 32
        %v1077 = vpop.permute.xlu0 %1076
        %1078 = vrot.lane.b32.xlu0 %v333, 32
        %v1079 = vpop.permute.xlu0 %1078
        %1080 = vrot.lane.b32.xlu0 %v334, 32
        %v1081 = vpop.permute.xlu0 %1080
        %1082 = vrot.lane.b32.xlu0 %v335, 32
        %v1083 = vpop.permute.xlu0 %1082
        %1084 = vrot.lane.b32.xlu0 %v336, 32
        %v1085 = vpop.permute.xlu0 %1084
        %1086 = vrot.lane.b32.xlu0 %v337, 32
        %v1087 = vpop.permute.xlu0 %1086
        %1088 = vrot.lane.b32.xlu0 %v338, 32
        %v1089 = vpop.permute.xlu0 %1088
        %1090 = vrot.lane.b32.xlu0 %v339, 32
        %v1091 = vpop.permute.xlu0 %1090
        %1092 = vrot.lane.b32.xlu0 %v340, 32
        %v1093 = vpop.permute.xlu0 %1092
        %1094 = vrot.lane.b32.xlu0 %v341, 32
        %v1095 = vpop.permute.xlu0 %1094
        %1096 = vrot.lane.b32.xlu0 %v342, 32
        %v1097 = vpop.permute.xlu0 %1096
        %1130 = vrot.lane.b32.xlu0 %v343, 36
        %v1131 = vpop.permute.xlu0 %1130
        %1132 = vrot.lane.b32.xlu0 %v344, 36
        %v1133 = vpop.permute.xlu0 %1132
        %1134 = vrot.lane.b32.xlu0 %v345, 36
        %v1135 = vpop.permute.xlu0 %1134
        %1136 = vrot.lane.b32.xlu0 %v346, 36
        %v1137 = vpop.permute.xlu0 %1136
        %1138 = vrot.lane.b32.xlu0 %v347, 36
        %v1139 = vpop.permute.xlu0 %1138
        %1140 = vrot.lane.b32.xlu0 %v348, 36
        %v1141 = vpop.permute.xlu0 %1140
        %1142 = vrot.lane.b32.xlu0 %v349, 36
        %v1143 = vpop.permute.xlu0 %1142
        %1144 = vrot.lane.b32.xlu0 %v350, 36
        %v1145 = vpop.permute.xlu0 %1144
        %1146 = vrot.lane.b32.xlu0 %v351, 36
        %v1147 = vpop.permute.xlu0 %1146
        %1148 = vrot.lane.b32.xlu0 %v352, 36
        %v1149 = vpop.permute.xlu0 %1148
        %1150 = vrot.lane.b32.xlu0 %v353, 36
        %v1151 = vpop.permute.xlu0 %1150
        %1152 = vrot.lane.b32.xlu0 %v354, 36
        %v1153 = vpop.permute.xlu0 %1152
        %1154 = vrot.lane.b32.xlu0 %v355, 36
        %v1155 = vpop.permute.xlu0 %1154
        %1156 = vrot.lane.b32.xlu0 %v356, 36
        %v1157 = vpop.permute.xlu0 %1156
        %1158 = vrot.lane.b32.xlu0 %v357, 36
        %v1159 = vpop.permute.xlu0 %1158
        %1160 = vrot.lane.b32.xlu0 %v358, 36
        %v1161 = vpop.permute.xlu0 %1160
        %1194 = vrot.lane.b32.xlu0 %v360, 40
        %v1195 = vpop.permute.xlu0 %1194
        %1196 = vrot.lane.b32.xlu0 %v361, 40
        %v1197 = vpop.permute.xlu0 %1196
        %1198 = vrot.lane.b32.xlu0 %v362, 40
        %v1199 = vpop.permute.xlu0 %1198
        %1200 = vrot.lane.b32.xlu0 %v363, 40
        %v1201 = vpop.permute.xlu0 %1200
        %1202 = vrot.lane.b32.xlu0 %v364, 40
        %v1203 = vpop.permute.xlu0 %1202
        %1204 = vrot.lane.b32.xlu0 %v365, 40
        %v1205 = vpop.permute.xlu0 %1204
        %1206 = vrot.lane.b32.xlu0 %v366, 40
        %v1207 = vpop.permute.xlu0 %1206
        %1208 = vrot.lane.b32.xlu0 %v367, 40
        %v1209 = vpop.permute.xlu0 %1208
        %1210 = vrot.lane.b32.xlu0 %v368, 40
        %v1211 = vpop.permute.xlu0 %1210
        %1212 = vrot.lane.b32.xlu0 %v369, 40
        %v1213 = vpop.permute.xlu0 %1212
        %1214 = vrot.lane.b32.xlu0 %v370, 40
        %v1215 = vpop.permute.xlu0 %1214
        %1216 = vrot.lane.b32.xlu0 %v371, 40
        %v1217 = vpop.permute.xlu0 %1216
        %1218 = vrot.lane.b32.xlu0 %v372, 40
        %v1219 = vpop.permute.xlu0 %1218
        %1220 = vrot.lane.b32.xlu0 %v373, 40
        %v1221 = vpop.permute.xlu0 %1220
        %1222 = vrot.lane.b32.xlu0 %v374, 40
        %v1223 = vpop.permute.xlu0 %1222
        %1224 = vrot.lane.b32.xlu0 %v375, 40
        %v1225 = vpop.permute.xlu0 %1224
        %1258 = vrot.lane.b32.xlu0 %v376, 44
        %v1259 = vpop.permute.xlu0 %1258
        %1260 = vrot.lane.b32.xlu0 %v377, 44
        %v1261 = vpop.permute.xlu0 %1260
        %1262 = vrot.lane.b32.xlu0 %v378, 44
        %v1263 = vpop.permute.xlu0 %1262
        %1264 = vrot.lane.b32.xlu0 %v379, 44
        %v1265 = vpop.permute.xlu0 %1264
        %1266 = vrot.lane.b32.xlu0 %v380, 44
        %v1267 = vpop.permute.xlu0 %1266
        %1268 = vrot.lane.b32.xlu0 %v381, 44
        %v1269 = vpop.permute.xlu0 %1268
        %1270 = vrot.lane.b32.xlu0 %v382, 44
        %v1271 = vpop.permute.xlu0 %1270
        %1272 = vrot.lane.b32.xlu0 %v383, 44
        %v1273 = vpop.permute.xlu0 %1272
        %1274 = vrot.lane.b32.xlu0 %v384, 44
        %v1275 = vpop.permute.xlu0 %1274
        %1276 = vrot.lane.b32.xlu0 %v385, 44
        %v1277 = vpop.permute.xlu0 %1276
        %1278 = vrot.lane.b32.xlu0 %v386, 44
        %v1279 = vpop.permute.xlu0 %1278
        %1280 = vrot.lane.b32.xlu0 %v387, 44
        %v1281 = vpop.permute.xlu0 %1280
        %1282 = vrot.lane.b32.xlu0 %v388, 44
        %v1283 = vpop.permute.xlu0 %1282
        %1284 = vrot.lane.b32.xlu0 %v389, 44
        %v1285 = vpop.permute.xlu0 %1284
        %1286 = vrot.lane.b32.xlu0 %v390, 44
        %v1287 = vpop.permute.xlu0 %1286
        %1288 = vrot.lane.b32.xlu0 %v391, 44
        %v1289 = vpop.permute.xlu0 %1288
        %1322 = vrot.lane.b32.xlu0 %v392, 48
        %v1323 = vpop.permute.xlu0 %1322
        %1324 = vrot.lane.b32.xlu0 %v393, 48
        %v1325 = vpop.permute.xlu0 %1324
        %1326 = vrot.lane.b32.xlu0 %v394, 48
        %v1327 = vpop.permute.xlu0 %1326
        %1328 = vrot.lane.b32.xlu0 %v395, 48
        %v1329 = vpop.permute.xlu0 %1328
        %1330 = vrot.lane.b32.xlu0 %v396, 48
        %v1331 = vpop.permute.xlu0 %1330
        %1332 = vrot.lane.b32.xlu0 %v397, 48
        %v1333 = vpop.permute.xlu0 %1332
        %1334 = vrot.lane.b32.xlu0 %v398, 48
        %v1335 = vpop.permute.xlu0 %1334
        %1336 = vrot.lane.b32.xlu0 %v399, 48
        %v1337 = vpop.permute.xlu0 %1336
        %1338 = vrot.lane.b32.xlu0 %v400, 48
        %v1339 = vpop.permute.xlu0 %1338
        %1340 = vrot.lane.b32.xlu0 %v401, 48
        %v1341 = vpop.permute.xlu0 %1340
        %1342 = vrot.lane.b32.xlu0 %v402, 48
        %v1343 = vpop.permute.xlu0 %1342
        %1344 = vrot.lane.b32.xlu0 %v403, 48
        %v1345 = vpop.permute.xlu0 %1344
        %1346 = vrot.lane.b32.xlu0 %v404, 48
        %v1347 = vpop.permute.xlu0 %1346
        %1348 = vrot.lane.b32.xlu0 %v405, 48
        %v1349 = vpop.permute.xlu0 %1348
        %1350 = vrot.lane.b32.xlu0 %v406, 48
        %v1351 = vpop.permute.xlu0 %1350
        %1352 = vrot.lane.b32.xlu0 %v407, 48
        %v1353 = vpop.permute.xlu0 %1352
        %1386 = vrot.lane.b32.xlu0 %v408, 52
        %v1387 = vpop.permute.xlu0 %1386
        %1388 = vrot.lane.b32.xlu0 %v409, 52
        %v1389 = vpop.permute.xlu0 %1388
        %1390 = vrot.lane.b32.xlu0 %v410, 52
        %v1391 = vpop.permute.xlu0 %1390
        %1392 = vrot.lane.b32.xlu0 %v411, 52
        %v1393 = vpop.permute.xlu0 %1392
        %1394 = vrot.lane.b32.xlu0 %v412, 52
        %v1395 = vpop.permute.xlu0 %1394
        %1396 = vrot.lane.b32.xlu0 %v413, 52
        %v1397 = vpop.permute.xlu0 %1396
        %1398 = vrot.lane.b32.xlu0 %v414, 52
        %v1399 = vpop.permute.xlu0 %1398
        %1400 = vrot.lane.b32.xlu0 %v415, 52
        %v1401 = vpop.permute.xlu0 %1400
        %1402 = vrot.lane.b32.xlu0 %v416, 52
        %v1403 = vpop.permute.xlu0 %1402
        %1404 = vrot.lane.b32.xlu0 %v417, 52
        %v1405 = vpop.permute.xlu0 %1404
        %1406 = vrot.lane.b32.xlu0 %v418, 52
        %v1407 = vpop.permute.xlu0 %1406
        %1408 = vrot.lane.b32.xlu0 %v419, 52
        %v1409 = vpop.permute.xlu0 %1408
        %1410 = vrot.lane.b32.xlu0 %v420, 52
        %v1411 = vpop.permute.xlu0 %1410
        %1412 = vrot.lane.b32.xlu0 %v421, 52
        %v1413 = vpop.permute.xlu0 %1412
        %1414 = vrot.lane.b32.xlu0 %v422, 52
        %v1415 = vpop.permute.xlu0 %1414
        %1416 = vrot.lane.b32.xlu0 %v423, 52
        %v1417 = vpop.permute.xlu0 %1416
        %1450 = vrot.lane.b32.xlu0 %v424, 56
        %v1451 = vpop.permute.xlu0 %1450
        %1452 = vrot.lane.b32.xlu0 %v425, 56
        %v1453 = vpop.permute.xlu0 %1452
        %1454 = vrot.lane.b32.xlu0 %v426, 56
        %v1455 = vpop.permute.xlu0 %1454
        %1456 = vrot.lane.b32.xlu0 %v427, 56
        %v1457 = vpop.permute.xlu0 %1456
        %1458 = vrot.lane.b32.xlu0 %v428, 56
        %v1459 = vpop.permute.xlu0 %1458
        %1460 = vrot.lane.b32.xlu0 %v429, 56
        %v1461 = vpop.permute.xlu0 %1460
        %1462 = vrot.lane.b32.xlu0 %v430, 56
        %v1463 = vpop.permute.xlu0 %1462
        %1464 = vrot.lane.b32.xlu0 %v431, 56
        %v1465 = vpop.permute.xlu0 %1464
        %1466 = vrot.lane.b32.xlu0 %v432, 56
        %v1467 = vpop.permute.xlu0 %1466
        %1468 = vrot.lane.b32.xlu0 %v433, 56
        %v1469 = vpop.permute.xlu0 %1468
        %1470 = vrot.lane.b32.xlu0 %v434, 56
        %v1471 = vpop.permute.xlu0 %1470
        %1472 = vrot.lane.b32.xlu0 %v435, 56
        %v1473 = vpop.permute.xlu0 %1472
        %1474 = vrot.lane.b32.xlu0 %v436, 56
        %v1475 = vpop.permute.xlu0 %1474
        %1476 = vrot.lane.b32.xlu0 %v437, 56
        %v1477 = vpop.permute.xlu0 %1476
        %1478 = vrot.lane.b32.xlu0 %v438, 56
        %v1479 = vpop.permute.xlu0 %1478
        %1480 = vrot.lane.b32.xlu0 %v439, 56
        %v1481 = vpop.permute.xlu0 %1480
        %1514 = vrot.lane.b32.xlu0 %v441, 60
        %v1515 = vpop.permute.xlu0 %1514
        %1516 = vrot.lane.b32.xlu0 %v442, 60
        %v1517 = vpop.permute.xlu0 %1516
        %1518 = vrot.lane.b32.xlu0 %v443, 60
        %v1519 = vpop.permute.xlu0 %1518
        %1520 = vrot.lane.b32.xlu0 %v444, 60
        %v1521 = vpop.permute.xlu0 %1520
        %1522 = vrot.lane.b32.xlu0 %v445, 60
        %v1523 = vpop.permute.xlu0 %1522
        %1524 = vrot.lane.b32.xlu0 %v446, 60
        %v1525 = vpop.permute.xlu0 %1524
        %1526 = vrot.lane.b32.xlu0 %v447, 60
        %v1527 = vpop.permute.xlu0 %1526
        %1528 = vrot.lane.b32.xlu0 %v448, 60
        %v1529 = vpop.permute.xlu0 %1528
        %1530 = vrot.lane.b32.xlu0 %v449, 60
        %v1531 = vpop.permute.xlu0 %1530
        %1532 = vrot.lane.b32.xlu0 %v450, 60
        %v1533 = vpop.permute.xlu0 %1532
        %1534 = vrot.lane.b32.xlu0 %v451, 60
        %v1535 = vpop.permute.xlu0 %1534
        %1536 = vrot.lane.b32.xlu0 %v452, 60
        %v1537 = vpop.permute.xlu0 %1536
        %1538 = vrot.lane.b32.xlu0 %v453, 60
        %v1539 = vpop.permute.xlu0 %1538
        %1540 = vrot.lane.b32.xlu0 %v454, 60
        %v1541 = vpop.permute.xlu0 %1540
        %1542 = vrot.lane.b32.xlu0 %v455, 60
        %v1543 = vpop.permute.xlu0 %1542
        %1544 = vrot.lane.b32.xlu0 %v456, 60
        %v1545 = vpop.permute.xlu0 %1544
        %vm1562 = vcmask 31744
        %v1563 = vsel %vm1562, %v198, %v619
        %v1564 = vsel %vm1562, %v199, %v621
        %v1565 = vsel %vm1562, %v200, %v623
        %v1566 = vsel %vm1562, %v201, %v625
        %v1567 = vsel %vm1562, %v202, %v627
        %v1568 = vsel %vm1562, %v203, %v629
        %v1569 = vsel %vm1562, %v204, %v631
        %v1570 = vsel %vm1562, %v205, %v633
        %v1571 = vsel %vm1562, %v206, %v635
        %v1572 = vsel %vm1562, %v207, %v637
        %v1573 = vsel %vm1562, %v208, %v639
        %v1574 = vsel %vm1562, %v209, %v641
        %v1575 = vsel %vm1562, %v210, %v643
        %v1576 = vsel %vm1562, %v211, %v645
        %v1577 = vsel %vm1562, %v212, %v647
        %v1578 = vsel %vm1562, %v213, %v649
        %vm1579 = vcmask 64512
        %v1580 = vsel %vm1579, %v1563, %v683
        %v1581 = vsel %vm1579, %v1564, %v685
        %v1582 = vsel %vm1579, %v1565, %v687
        %v1583 = vsel %vm1579, %v1566, %v689
        %v1584 = vsel %vm1579, %v1567, %v691
        %v1585 = vsel %vm1579, %v1568, %v693
        %v1586 = vsel %vm1579, %v1569, %v695
        %v1587 = vsel %vm1579, %v1570, %v697
        %v1588 = vsel %vm1579, %v1571, %v699
        %v1589 = vsel %vm1579, %v1572, %v701
        %v1590 = vsel %vm1579, %v1573, %v703
        %v1591 = vsel %vm1579, %v1574, %v705
        %v1592 = vsel %vm1579, %v1575, %v707
        %v1593 = vsel %vm1579, %v1576, %v709
        %v1594 = vsel %vm1579, %v1577, %v711
        %v1595 = vsel %vm1579, %v1578, %v713
        %vm1596 = vcmask 97280
        %v1597 = vsel %vm1596, %v1580, %v747
        %v1598 = vsel %vm1596, %v1581, %v749
        %v1599 = vsel %vm1596, %v1582, %v751
        %v1600 = vsel %vm1596, %v1583, %v753
        %v1601 = vsel %vm1596, %v1584, %v755
        %v1602 = vsel %vm1596, %v1585, %v757
        %v1603 = vsel %vm1596, %v1586, %v759
        %v1604 = vsel %vm1596, %v1587, %v761
        %v1605 = vsel %vm1596, %v1588, %v763
        %v1606 = vsel %vm1596, %v1589, %v765
        %v1607 = vsel %vm1596, %v1590, %v767
        %v1608 = vsel %vm1596, %v1591, %v769
        %v1609 = vsel %vm1596, %v1592, %v771
        %v1610 = vsel %vm1596, %v1593, %v773
        %v1611 = vsel %vm1596, %v1594, %v775
        %v1612 = vsel %vm1596, %v1595, %v777
        %vm1613 = vcmask 130048
        %v1614 = vsel %vm1613, %v1597, %v811
        %v1615 = vsel %vm1613, %v1598, %v813
        %v1616 = vsel %vm1613, %v1599, %v815
        %v1617 = vsel %vm1613, %v1600, %v817
        %v1618 = vsel %vm1613, %v1601, %v819
        %v1619 = vsel %vm1613, %v1602, %v821
        %v1620 = vsel %vm1613, %v1603, %v823
        %v1621 = vsel %vm1613, %v1604, %v825
        %v1622 = vsel %vm1613, %v1605, %v827
        %v1623 = vsel %vm1613, %v1606, %v829
        %v1624 = vsel %vm1613, %v1607, %v831
        %v1625 = vsel %vm1613, %v1608, %v833
        %v1626 = vsel %vm1613, %v1609, %v835
        %v1627 = vsel %vm1613, %v1610, %v837
        %v1628 = vsel %vm1613, %v1611, %v839
        %v1629 = vsel %vm1613, %v1612, %v841
        %vm1630 = vcmask 162816
        %v1631 = vsel %vm1630, %v1614, %v875
        %v1632 = vsel %vm1630, %v1615, %v877
        %v1633 = vsel %vm1630, %v1616, %v879
        %v1634 = vsel %vm1630, %v1617, %v881
        %v1635 = vsel %vm1630, %v1618, %v883
        %v1636 = vsel %vm1630, %v1619, %v885
        %v1637 = vsel %vm1630, %v1620, %v887
        %v1638 = vsel %vm1630, %v1621, %v889
        %v1639 = vsel %vm1630, %v1622, %v891
        %v1640 = vsel %vm1630, %v1623, %v893
        %v1641 = vsel %vm1630, %v1624, %v895
        %v1642 = vsel %vm1630, %v1625, %v897
        %v1643 = vsel %vm1630, %v1626, %v899
        %v1644 = vsel %vm1630, %v1627, %v901
        %v1645 = vsel %vm1630, %v1628, %v903
        %v1646 = vsel %vm1630, %v1629, %v905
        %vm1647 = vcmask 195584
        %v1648 = vsel %vm1647, %v1631, %v939
        %v1649 = vsel %vm1647, %v1632, %v941
        %v1650 = vsel %vm1647, %v1633, %v943
        %v1651 = vsel %vm1647, %v1634, %v945
        %v1652 = vsel %vm1647, %v1635, %v947
        %v1653 = vsel %vm1647, %v1636, %v949
        %v1654 = vsel %vm1647, %v1637, %v951
        %v1655 = vsel %vm1647, %v1638, %v953
        %v1656 = vsel %vm1647, %v1639, %v955
        %v1657 = vsel %vm1647, %v1640, %v957
        %v1658 = vsel %vm1647, %v1641, %v959
        %v1659 = vsel %vm1647, %v1642, %v961
        %v1660 = vsel %vm1647, %v1643, %v963
        %v1661 = vsel %vm1647, %v1644, %v965
        %v1662 = vsel %vm1647, %v1645, %v967
        %v1663 = vsel %vm1647, %v1646, %v969
        %vm1664 = vcmask 228352
        %v1665 = vsel %vm1664, %v1648, %v1003
        %v1666 = vsel %vm1664, %v1649, %v1005
        %v1667 = vsel %vm1664, %v1650, %v1007
        %v1668 = vsel %vm1664, %v1651, %v1009
        %v1669 = vsel %vm1664, %v1652, %v1011
        %v1670 = vsel %vm1664, %v1653, %v1013
        %v1671 = vsel %vm1664, %v1654, %v1015
        %v1672 = vsel %vm1664, %v1655, %v1017
        %v1673 = vsel %vm1664, %v1656, %v1019
        %v1674 = vsel %vm1664, %v1657, %v1021
        %v1675 = vsel %vm1664, %v1658, %v1023
        %v1676 = vsel %vm1664, %v1659, %v1025
        %v1677 = vsel %vm1664, %v1660, %v1027
        %v1678 = vsel %vm1664, %v1661, %v1029
        %v1679 = vsel %vm1664, %v1662, %v1031
        %v1680 = vsel %vm1664, %v1663, %v1033
        %vm1681 = vcmask 261120
        %v1682 = vsel %vm1681, %v1665, %v1067
        %v1683 = vsel %vm1681, %v1666, %v1069
        %v1684 = vsel %vm1681, %v1667, %v1071
        %v1685 = vsel %vm1681, %v1668, %v1073
        %v1686 = vsel %vm1681, %v1669, %v1075
        %v1687 = vsel %vm1681, %v1670, %v1077
        %v1688 = vsel %vm1681, %v1671, %v1079
        %v1689 = vsel %vm1681, %v1672, %v1081
        %v1690 = vsel %vm1681, %v1673, %v1083
        %v1691 = vsel %vm1681, %v1674, %v1085
        %v1692 = vsel %vm1681, %v1675, %v1087
        %v1693 = vsel %vm1681, %v1676, %v1089
        %v1694 = vsel %vm1681, %v1677, %v1091
        %v1695 = vsel %vm1681, %v1678, %v1093
        %v1696 = vsel %vm1681, %v1679, %v1095
        %v1697 = vsel %vm1681, %v1680, %v1097
        %vm1698 = vcmask 293888
        %v1699 = vsel %vm1698, %v1682, %v1131
        %v1700 = vsel %vm1698, %v1683, %v1133
        %v1701 = vsel %vm1698, %v1684, %v1135
        %v1702 = vsel %vm1698, %v1685, %v1137
        %v1703 = vsel %vm1698, %v1686, %v1139
        %v1704 = vsel %vm1698, %v1687, %v1141
        %v1705 = vsel %vm1698, %v1688, %v1143
        %v1706 = vsel %vm1698, %v1689, %v1145
        %v1707 = vsel %vm1698, %v1690, %v1147
        %v1708 = vsel %vm1698, %v1691, %v1149
        %v1709 = vsel %vm1698, %v1692, %v1151
        %v1710 = vsel %vm1698, %v1693, %v1153
        %v1711 = vsel %vm1698, %v1694, %v1155
        %v1712 = vsel %vm1698, %v1695, %v1157
        %v1713 = vsel %vm1698, %v1696, %v1159
        %v1714 = vsel %vm1698, %v1697, %v1161
        %vm1715 = vcmask 326656
        %v1716 = vsel %vm1715, %v1699, %v1195
        %v1717 = vsel %vm1715, %v1700, %v1197
        %v1718 = vsel %vm1715, %v1701, %v1199
        %v1719 = vsel %vm1715, %v1702, %v1201
        %v1720 = vsel %vm1715, %v1703, %v1203
        %v1721 = vsel %vm1715, %v1704, %v1205
        %v1722 = vsel %vm1715, %v1705, %v1207
        %v1723 = vsel %vm1715, %v1706, %v1209
        %v1724 = vsel %vm1715, %v1707, %v1211
        %v1725 = vsel %vm1715, %v1708, %v1213
        %v1726 = vsel %vm1715, %v1709, %v1215
        %v1727 = vsel %vm1715, %v1710, %v1217
        %v1728 = vsel %vm1715, %v1711, %v1219
        %v1729 = vsel %vm1715, %v1712, %v1221
        %v1730 = vsel %vm1715, %v1713, %v1223
        %v1731 = vsel %vm1715, %v1714, %v1225
        %vm1732 = vcmask 359424
        %v1733 = vsel %vm1732, %v1716, %v1259
        %v1734 = vsel %vm1732, %v1717, %v1261
        %v1735 = vsel %vm1732, %v1718, %v1263
        %v1736 = vsel %vm1732, %v1719, %v1265
        %v1737 = vsel %vm1732, %v1720, %v1267
        %v1738 = vsel %vm1732, %v1721, %v1269
        %v1739 = vsel %vm1732, %v1722, %v1271
        %v1740 = vsel %vm1732, %v1723, %v1273
        %v1741 = vsel %vm1732, %v1724, %v1275
        %v1742 = vsel %vm1732, %v1725, %v1277
        %v1743 = vsel %vm1732, %v1726, %v1279
        %v1744 = vsel %vm1732, %v1727, %v1281
        %v1745 = vsel %vm1732, %v1728, %v1283
        %v1746 = vsel %vm1732, %v1729, %v1285
        %v1747 = vsel %vm1732, %v1730, %v1287
        %v1748 = vsel %vm1732, %v1731, %v1289
        %vm1749 = vcmask 392192
        %v1750 = vsel %vm1749, %v1733, %v1323
        %v1751 = vsel %vm1749, %v1734, %v1325
        %v1752 = vsel %vm1749, %v1735, %v1327
        %v1753 = vsel %vm1749, %v1736, %v1329
        %v1754 = vsel %vm1749, %v1737, %v1331
        %v1755 = vsel %vm1749, %v1738, %v1333
        %v1756 = vsel %vm1749, %v1739, %v1335
        %v1757 = vsel %vm1749, %v1740, %v1337
        %v1758 = vsel %vm1749, %v1741, %v1339
        %v1759 = vsel %vm1749, %v1742, %v1341
        %v1760 = vsel %vm1749, %v1743, %v1343
        %v1761 = vsel %vm1749, %v1744, %v1345
        %v1762 = vsel %vm1749, %v1745, %v1347
        %v1763 = vsel %vm1749, %v1746, %v1349
        %v1764 = vsel %vm1749, %v1747, %v1351
        %v1765 = vsel %vm1749, %v1748, %v1353
        %vm1766 = vcmask 424960
        %v1767 = vsel %vm1766, %v1750, %v1387
        %v1768 = vsel %vm1766, %v1751, %v1389
        %v1769 = vsel %vm1766, %v1752, %v1391
        %v1770 = vsel %vm1766, %v1753, %v1393
        %v1771 = vsel %vm1766, %v1754, %v1395
        %v1772 = vsel %vm1766, %v1755, %v1397
        %v1773 = vsel %vm1766, %v1756, %v1399
        %v1774 = vsel %vm1766, %v1757, %v1401
        %v1775 = vsel %vm1766, %v1758, %v1403
        %v1776 = vsel %vm1766, %v1759, %v1405
        %v1777 = vsel %vm1766, %v1760, %v1407
        %v1778 = vsel %vm1766, %v1761, %v1409
        %v1779 = vsel %vm1766, %v1762, %v1411
        %v1780 = vsel %vm1766, %v1763, %v1413
        %v1781 = vsel %vm1766, %v1764, %v1415
        %v1782 = vsel %vm1766, %v1765, %v1417
        %vm1783 = vcmask 457728
        %v1784 = vsel %vm1783, %v1767, %v1451
        %v1785 = vsel %vm1783, %v1768, %v1453
        %v1786 = vsel %vm1783, %v1769, %v1455
        %v1787 = vsel %vm1783, %v1770, %v1457
        %v1788 = vsel %vm1783, %v1771, %v1459
        %v1789 = vsel %vm1783, %v1772, %v1461
        %v1790 = vsel %vm1783, %v1773, %v1463
        %v1791 = vsel %vm1783, %v1774, %v1465
        %v1792 = vsel %vm1783, %v1775, %v1467
        %v1793 = vsel %vm1783, %v1776, %v1469
        %v1794 = vsel %vm1783, %v1777, %v1471
        %v1795 = vsel %vm1783, %v1778, %v1473
        %v1796 = vsel %vm1783, %v1779, %v1475
        %v1797 = vsel %vm1783, %v1780, %v1477
        %v1798 = vsel %vm1783, %v1781, %v1479
        %v1799 = vsel %vm1783, %v1782, %v1481
        %vm1800 = vcmask 490496
        %v1801 = vsel %vm1800, %v1784, %v1515
        %v1802 = vsel %vm1800, %v1785, %v1517
        %v1803 = vsel %vm1800, %v1786, %v1519
        %v1804 = vsel %vm1800, %v1787, %v1521
        %v1805 = vsel %vm1800, %v1788, %v1523
        %v1806 = vsel %vm1800, %v1789, %v1525
        %v1807 = vsel %vm1800, %v1790, %v1527
        %v1808 = vsel %vm1800, %v1791, %v1529
        %v1809 = vsel %vm1800, %v1792, %v1531
        %v1810 = vsel %vm1800, %v1793, %v1533
        %v1811 = vsel %vm1800, %v1794, %v1535
        %v1812 = vsel %vm1800, %v1795, %v1537
        %v1813 = vsel %vm1800, %v1796, %v1539
        %v1814 = vsel %vm1800, %v1797, %v1541
        %v1815 = vsel %vm1800, %v1798, %v1543
        %v1816 = vsel %vm1800, %v1799, %v1545
        %1833 = vrot.lane.b32.xlu0 %v473, 4
        %v1834 = vpop.permute.xlu0 %1833
        %1835 = vrot.lane.b32.xlu0 %v474, 4
        %v1836 = vpop.permute.xlu0 %1835
        %1837 = vrot.lane.b32.xlu0 %v475, 4
        %v1838 = vpop.permute.xlu0 %1837
        %1839 = vrot.lane.b32.xlu0 %v476, 4
        %v1840 = vpop.permute.xlu0 %1839
        %1841 = vrot.lane.b32.xlu0 %v477, 4
        %v1842 = vpop.permute.xlu0 %1841
        %1843 = vrot.lane.b32.xlu0 %v478, 4
        %v1844 = vpop.permute.xlu0 %1843
        %1845 = vrot.lane.b32.xlu0 %v479, 4
        %v1846 = vpop.permute.xlu0 %1845
        %1847 = vrot.lane.b32.xlu0 %v480, 4
        %v1848 = vpop.permute.xlu0 %1847
        %1849 = vrot.lane.b32.xlu0 %v481, 4
        %v1850 = vpop.permute.xlu0 %1849
        %1851 = vrot.lane.b32.xlu0 %v482, 4
        %v1852 = vpop.permute.xlu0 %1851
        %1853 = vrot.lane.b32.xlu0 %v483, 4
        %v1854 = vpop.permute.xlu0 %1853
        %1855 = vrot.lane.b32.xlu0 %v484, 4
        %v1856 = vpop.permute.xlu0 %1855
        %1857 = vrot.lane.b32.xlu0 %v485, 4
        %v1858 = vpop.permute.xlu0 %1857
        %1859 = vrot.lane.b32.xlu0 %v486, 4
        %v1860 = vpop.permute.xlu0 %1859
        %1861 = vrot.lane.b32.xlu0 %v487, 4
        %v1862 = vpop.permute.xlu0 %1861
        %1863 = vrot.lane.b32.xlu0 %v488, 4
        %v1864 = vpop.permute.xlu0 %1863
        %1897 = vrot.lane.b32.xlu0 %v489, 8
        %v1898 = vpop.permute.xlu0 %1897
        %1899 = vrot.lane.b32.xlu0 %v490, 8
        %v1900 = vpop.permute.xlu0 %1899
        %1901 = vrot.lane.b32.xlu0 %v491, 8
        %v1902 = vpop.permute.xlu0 %1901
        %1903 = vrot.lane.b32.xlu0 %v492, 8
        %v1904 = vpop.permute.xlu0 %1903
        %1905 = vrot.lane.b32.xlu0 %v493, 8
        %v1906 = vpop.permute.xlu0 %1905
        %1907 = vrot.lane.b32.xlu0 %v494, 8
        %v1908 = vpop.permute.xlu0 %1907
        %1909 = vrot.lane.b32.xlu0 %v495, 8
        %v1910 = vpop.permute.xlu0 %1909
        %1911 = vrot.lane.b32.xlu0 %v496, 8
        %v1912 = vpop.permute.xlu0 %1911
        %1913 = vrot.lane.b32.xlu0 %v497, 8
        %v1914 = vpop.permute.xlu0 %1913
        %1915 = vrot.lane.b32.xlu0 %v498, 8
        %v1916 = vpop.permute.xlu0 %1915
        %1917 = vrot.lane.b32.xlu0 %v499, 8
        %v1918 = vpop.permute.xlu0 %1917
        %1919 = vrot.lane.b32.xlu0 %v500, 8
        %v1920 = vpop.permute.xlu0 %1919
        %1921 = vrot.lane.b32.xlu0 %v501, 8
        %v1922 = vpop.permute.xlu0 %1921
        %1923 = vrot.lane.b32.xlu0 %v502, 8
        %v1924 = vpop.permute.xlu0 %1923
        %1925 = vrot.lane.b32.xlu0 %v503, 8
        %v1926 = vpop.permute.xlu0 %1925
        %1927 = vrot.lane.b32.xlu0 %v504, 8
        %v1928 = vpop.permute.xlu0 %1927
        %1961 = vrot.lane.b32.xlu0 %v505, 12
        %v1962 = vpop.permute.xlu0 %1961
        %1963 = vrot.lane.b32.xlu0 %v506, 12
        %v1964 = vpop.permute.xlu0 %1963
        %1965 = vrot.lane.b32.xlu0 %v507, 12
        %v1966 = vpop.permute.xlu0 %1965
        %1967 = vrot.lane.b32.xlu0 %v508, 12
        %v1968 = vpop.permute.xlu0 %1967
        %1969 = vrot.lane.b32.xlu0 %v509, 12
        %v1970 = vpop.permute.xlu0 %1969
        %1971 = vrot.lane.b32.xlu0 %v510, 12
        %v1972 = vpop.permute.xlu0 %1971
        %1973 = vrot.lane.b32.xlu0 %v511, 12
        %v1974 = vpop.permute.xlu0 %1973
        %1975 = vrot.lane.b32.xlu0 %v512, 12
        %v1976 = vpop.permute.xlu0 %1975
        %1977 = vrot.lane.b32.xlu0 %v513, 12
        %v1978 = vpop.permute.xlu0 %1977
        %1979 = vrot.lane.b32.xlu0 %v514, 12
        %v1980 = vpop.permute.xlu0 %1979
        %1981 = vrot.lane.b32.xlu0 %v515, 12
        %v1982 = vpop.permute.xlu0 %1981
        %1983 = vrot.lane.b32.xlu0 %v516, 12
        %v1984 = vpop.permute.xlu0 %1983
        %1985 = vrot.lane.b32.xlu0 %v517, 12
        %v1986 = vpop.permute.xlu0 %1985
        %1987 = vrot.lane.b32.xlu0 %v518, 12
        %v1988 = vpop.permute.xlu0 %1987
        %1989 = vrot.lane.b32.xlu0 %v519, 12
        %v1990 = vpop.permute.xlu0 %1989
        %1991 = vrot.lane.b32.xlu0 %v520, 12
        %v1992 = vpop.permute.xlu0 %1991
        %2025 = vrot.lane.b32.xlu0 %v522, 16
        %v2026 = vpop.permute.xlu0 %2025
        %2027 = vrot.lane.b32.xlu0 %v523, 16
        %v2028 = vpop.permute.xlu0 %2027
        %2029 = vrot.lane.b32.xlu0 %v524, 16
        %v2030 = vpop.permute.xlu0 %2029
        %2031 = vrot.lane.b32.xlu0 %v525, 16
        %v2032 = vpop.permute.xlu0 %2031
        %2033 = vrot.lane.b32.xlu0 %v526, 16
        %v2034 = vpop.permute.xlu0 %2033
        %2035 = vrot.lane.b32.xlu0 %v527, 16
        %v2036 = vpop.permute.xlu0 %2035
        %2037 = vrot.lane.b32.xlu0 %v528, 16
        %v2038 = vpop.permute.xlu0 %2037
        %2039 = vrot.lane.b32.xlu0 %v529, 16
        %v2040 = vpop.permute.xlu0 %2039
        %2041 = vrot.lane.b32.xlu0 %v530, 16
        %v2042 = vpop.permute.xlu0 %2041
        %2043 = vrot.lane.b32.xlu0 %v531, 16
        %v2044 = vpop.permute.xlu0 %2043
        %2045 = vrot.lane.b32.xlu0 %v532, 16
        %v2046 = vpop.permute.xlu0 %2045
        %2047 = vrot.lane.b32.xlu0 %v533, 16
        %v2048 = vpop.permute.xlu0 %2047
        %2049 = vrot.lane.b32.xlu0 %v534, 16
        %v2050 = vpop.permute.xlu0 %2049
        %2051 = vrot.lane.b32.xlu0 %v535, 16
        %v2052 = vpop.permute.xlu0 %2051
        %2053 = vrot.lane.b32.xlu0 %v536, 16
        %v2054 = vpop.permute.xlu0 %2053
        %2055 = vrot.lane.b32.xlu0 %v537, 16
        %v2056 = vpop.permute.xlu0 %2055
        %2089 = vrot.lane.b32.xlu0 %v538, 20
        %v2090 = vpop.permute.xlu0 %2089
        %2091 = vrot.lane.b32.xlu0 %v539, 20
        %v2092 = vpop.permute.xlu0 %2091
        %2093 = vrot.lane.b32.xlu0 %v540, 20
        %v2094 = vpop.permute.xlu0 %2093
        %2095 = vrot.lane.b32.xlu0 %v541, 20
        %v2096 = vpop.permute.xlu0 %2095
        %2097 = vrot.lane.b32.xlu0 %v542, 20
        %v2098 = vpop.permute.xlu0 %2097
        %2099 = vrot.lane.b32.xlu0 %v543, 20
        %v2100 = vpop.permute.xlu0 %2099
        %2101 = vrot.lane.b32.xlu0 %v544, 20
        %v2102 = vpop.permute.xlu0 %2101
        %2103 = vrot.lane.b32.xlu0 %v545, 20
        %v2104 = vpop.permute.xlu0 %2103
        %2105 = vrot.lane.b32.xlu0 %v546, 20
        %v2106 = vpop.permute.xlu0 %2105
        %2107 = vrot.lane.b32.xlu0 %v547, 20
        %v2108 = vpop.permute.xlu0 %2107
        %2109 = vrot.lane.b32.xlu0 %v548, 20
        %v2110 = vpop.permute.xlu0 %2109
        %2111 = vrot.lane.b32.xlu0 %v549, 20
        %v2112 = vpop.permute.xlu0 %2111
        %2113 = vrot.lane.b32.xlu0 %v550, 20
        %v2114 = vpop.permute.xlu0 %2113
        %2115 = vrot.lane.b32.xlu0 %v551, 20
        %v2116 = vpop.permute.xlu0 %2115
        %2117 = vrot.lane.b32.xlu0 %v552, 20
        %v2118 = vpop.permute.xlu0 %2117
        %2119 = vrot.lane.b32.xlu0 %v553, 20
        %v2120 = vpop.permute.xlu0 %2119
        %2153 = vrot.lane.b32.xlu0 %v554, 24
        %v2154 = vpop.permute.xlu0 %2153
        %2155 = vrot.lane.b32.xlu0 %v555, 24
        %v2156 = vpop.permute.xlu0 %2155
        %2157 = vrot.lane.b32.xlu0 %v556, 24
        %v2158 = vpop.permute.xlu0 %2157
        %2159 = vrot.lane.b32.xlu0 %v557, 24
        %v2160 = vpop.permute.xlu0 %2159
        %2161 = vrot.lane.b32.xlu0 %v558, 24
        %v2162 = vpop.permute.xlu0 %2161
        %2163 = vrot.lane.b32.xlu0 %v559, 24
        %v2164 = vpop.permute.xlu0 %2163
        %2165 = vrot.lane.b32.xlu0 %v560, 24
        %v2166 = vpop.permute.xlu0 %2165
        %2167 = vrot.lane.b32.xlu0 %v561, 24
        %v2168 = vpop.permute.xlu0 %2167
        %2169 = vrot.lane.b32.xlu0 %v562, 24
        %v2170 = vpop.permute.xlu0 %2169
        %2171 = vrot.lane.b32.xlu0 %v563, 24
        %v2172 = vpop.permute.xlu0 %2171
        %2173 = vrot.lane.b32.xlu0 %v564, 24
        %v2174 = vpop.permute.xlu0 %2173
        %2175 = vrot.lane.b32.xlu0 %v565, 24
        %v2176 = vpop.permute.xlu0 %2175
        %2177 = vrot.lane.b32.xlu0 %v566, 24
        %v2178 = vpop.permute.xlu0 %2177
        %2179 = vrot.lane.b32.xlu0 %v567, 24
        %v2180 = vpop.permute.xlu0 %2179
        %2181 = vrot.lane.b32.xlu0 %v568, 24
        %v2182 = vpop.permute.xlu0 %2181
        %2183 = vrot.lane.b32.xlu0 %v569, 24
        %v2184 = vpop.permute.xlu0 %2183
        %2217 = vrot.lane.b32.xlu0 %v570, 28
        %v2218 = vpop.permute.xlu0 %2217
        %2219 = vrot.lane.b32.xlu0 %v571, 28
        %v2220 = vpop.permute.xlu0 %2219
        %2221 = vrot.lane.b32.xlu0 %v572, 28
        %v2222 = vpop.permute.xlu0 %2221
        %2223 = vrot.lane.b32.xlu0 %v573, 28
        %v2224 = vpop.permute.xlu0 %2223
        %2225 = vrot.lane.b32.xlu0 %v574, 28
        %v2226 = vpop.permute.xlu0 %2225
        %2227 = vrot.lane.b32.xlu0 %v575, 28
        %v2228 = vpop.permute.xlu0 %2227
        %2229 = vrot.lane.b32.xlu0 %v576, 28
        %v2230 = vpop.permute.xlu0 %2229
        %2231 = vrot.lane.b32.xlu0 %v577, 28
        %v2232 = vpop.permute.xlu0 %2231
        %2233 = vrot.lane.b32.xlu0 %v578, 28
        %v2234 = vpop.permute.xlu0 %2233
        %2235 = vrot.lane.b32.xlu0 %v579, 28
        %v2236 = vpop.permute.xlu0 %2235
        %2237 = vrot.lane.b32.xlu0 %v580, 28
        %v2238 = vpop.permute.xlu0 %2237
        %2239 = vrot.lane.b32.xlu0 %v581, 28
        %v2240 = vpop.permute.xlu0 %2239
        %2241 = vrot.lane.b32.xlu0 %v582, 28
        %v2242 = vpop.permute.xlu0 %2241
        %2243 = vrot.lane.b32.xlu0 %v583, 28
        %v2244 = vpop.permute.xlu0 %2243
        %2245 = vrot.lane.b32.xlu0 %v584, 28
        %v2246 = vpop.permute.xlu0 %2245
        %2247 = vrot.lane.b32.xlu0 %v585, 28
        %v2248 = vpop.permute.xlu0 %2247
        %2281 = vrot.lane.b32.xlu0 %v586, 32
        %v2282 = vpop.permute.xlu0 %2281
        %2283 = vrot.lane.b32.xlu0 %v587, 32
        %v2284 = vpop.permute.xlu0 %2283
        %2285 = vrot.lane.b32.xlu0 %v588, 32
        %v2286 = vpop.permute.xlu0 %2285
        %2287 = vrot.lane.b32.xlu0 %v589, 32
        %v2288 = vpop.permute.xlu0 %2287
        %2289 = vrot.lane.b32.xlu0 %v590, 32
        %v2290 = vpop.permute.xlu0 %2289
        %2291 = vrot.lane.b32.xlu0 %v591, 32
        %v2292 = vpop.permute.xlu0 %2291
        %2293 = vrot.lane.b32.xlu0 %v592, 32
        %v2294 = vpop.permute.xlu0 %2293
        %2295 = vrot.lane.b32.xlu0 %v593, 32
        %v2296 = vpop.permute.xlu0 %2295
        %2297 = vrot.lane.b32.xlu0 %v594, 32
        %v2298 = vpop.permute.xlu0 %2297
        %2299 = vrot.lane.b32.xlu0 %v595, 32
        %v2300 = vpop.permute.xlu0 %2299
        %2301 = vrot.lane.b32.xlu0 %v596, 32
        %v2302 = vpop.permute.xlu0 %2301
        %2303 = vrot.lane.b32.xlu0 %v597, 32
        %v2304 = vpop.permute.xlu0 %2303
        %2305 = vrot.lane.b32.xlu0 %v598, 32
        %v2306 = vpop.permute.xlu0 %2305
        %2307 = vrot.lane.b32.xlu0 %v599, 32
        %v2308 = vpop.permute.xlu0 %2307
        %2309 = vrot.lane.b32.xlu0 %v600, 32
        %v2310 = vpop.permute.xlu0 %2309
        %2311 = vrot.lane.b32.xlu0 %v601, 32
        %v2312 = vpop.permute.xlu0 %2311
        %v2329 = vsel %vm1562, %v457, %v1834
        %v2330 = vsel %vm1562, %v458, %v1836
        %v2331 = vsel %vm1562, %v459, %v1838
        %v2332 = vsel %vm1562, %v460, %v1840
        %v2333 = vsel %vm1562, %v461, %v1842
        %v2334 = vsel %vm1562, %v462, %v1844
        %v2335 = vsel %vm1562, %v463, %v1846
        %v2336 = vsel %vm1562, %v464, %v1848
        %v2337 = vsel %vm1562, %v465, %v1850
        %v2338 = vsel %vm1562, %v466, %v1852
        %v2339 = vsel %vm1562, %v467, %v1854
        %v2340 = vsel %vm1562, %v468, %v1856
        %v2341 = vsel %vm1562, %v469, %v1858
        %v2342 = vsel %vm1562, %v470, %v1860
        %v2343 = vsel %vm1562, %v471, %v1862
        %v2344 = vsel %vm1562, %v472, %v1864
        %v2345 = vsel %vm1579, %v2329, %v1898
        %v2346 = vsel %vm1579, %v2330, %v1900
        %v2347 = vsel %vm1579, %v2331, %v1902
        %v2348 = vsel %vm1579, %v2332, %v1904
        %v2349 = vsel %vm1579, %v2333, %v1906
        %v2350 = vsel %vm1579, %v2334, %v1908
        %v2351 = vsel %vm1579, %v2335, %v1910
        %v2352 = vsel %vm1579, %v2336, %v1912
        %v2353 = vsel %vm1579, %v2337, %v1914
        %v2354 = vsel %vm1579, %v2338, %v1916
        %v2355 = vsel %vm1579, %v2339, %v1918
        %v2356 = vsel %vm1579, %v2340, %v1920
        %v2357 = vsel %vm1579, %v2341, %v1922
        %v2358 = vsel %vm1579, %v2342, %v1924
        %v2359 = vsel %vm1579, %v2343, %v1926
        %v2360 = vsel %vm1579, %v2344, %v1928
        %v2361 = vsel %vm1596, %v2345, %v1962
        %v2362 = vsel %vm1596, %v2346, %v1964
        %v2363 = vsel %vm1596, %v2347, %v1966
        %v2364 = vsel %vm1596, %v2348, %v1968
        %v2365 = vsel %vm1596, %v2349, %v1970
        %v2366 = vsel %vm1596, %v2350, %v1972
        %v2367 = vsel %vm1596, %v2351, %v1974
        %v2368 = vsel %vm1596, %v2352, %v1976
        %v2369 = vsel %vm1596, %v2353, %v1978
        %v2370 = vsel %vm1596, %v2354, %v1980
        %v2371 = vsel %vm1596, %v2355, %v1982
        %v2372 = vsel %vm1596, %v2356, %v1984
        %v2373 = vsel %vm1596, %v2357, %v1986
        %v2374 = vsel %vm1596, %v2358, %v1988
        %v2375 = vsel %vm1596, %v2359, %v1990
        %v2376 = vsel %vm1596, %v2360, %v1992
        %v2377 = vsel %vm1613, %v2361, %v2026
        %v2378 = vsel %vm1613, %v2362, %v2028
        %v2379 = vsel %vm1613, %v2363, %v2030
        %v2380 = vsel %vm1613, %v2364, %v2032
        %v2381 = vsel %vm1613, %v2365, %v2034
        %v2382 = vsel %vm1613, %v2366, %v2036
        %v2383 = vsel %vm1613, %v2367, %v2038
        %v2384 = vsel %vm1613, %v2368, %v2040
        %v2385 = vsel %vm1613, %v2369, %v2042
        %v2386 = vsel %vm1613, %v2370, %v2044
        %v2387 = vsel %vm1613, %v2371, %v2046
        %v2388 = vsel %vm1613, %v2372, %v2048
        %v2389 = vsel %vm1613, %v2373, %v2050
        %v2390 = vsel %vm1613, %v2374, %v2052
        %v2391 = vsel %vm1613, %v2375, %v2054
        %v2392 = vsel %vm1613, %v2376, %v2056
        %v2393 = vsel %vm1630, %v2377, %v2090
        %v2394 = vsel %vm1630, %v2378, %v2092
        %v2395 = vsel %vm1630, %v2379, %v2094
        %v2396 = vsel %vm1630, %v2380, %v2096
        %v2397 = vsel %vm1630, %v2381, %v2098
        %v2398 = vsel %vm1630, %v2382, %v2100
        %v2399 = vsel %vm1630, %v2383, %v2102
        %v2400 = vsel %vm1630, %v2384, %v2104
        %v2401 = vsel %vm1630, %v2385, %v2106
        %v2402 = vsel %vm1630, %v2386, %v2108
        %v2403 = vsel %vm1630, %v2387, %v2110
        %v2404 = vsel %vm1630, %v2388, %v2112
        %v2405 = vsel %vm1630, %v2389, %v2114
        %v2406 = vsel %vm1630, %v2390, %v2116
        %v2407 = vsel %vm1630, %v2391, %v2118
        %v2408 = vsel %vm1630, %v2392, %v2120
        %v2409 = vsel %vm1647, %v2393, %v2154
        %v2410 = vsel %vm1647, %v2394, %v2156
        %v2411 = vsel %vm1647, %v2395, %v2158
        %v2412 = vsel %vm1647, %v2396, %v2160
        %v2413 = vsel %vm1647, %v2397, %v2162
        %v2414 = vsel %vm1647, %v2398, %v2164
        %v2415 = vsel %vm1647, %v2399, %v2166
        %v2416 = vsel %vm1647, %v2400, %v2168
        %v2417 = vsel %vm1647, %v2401, %v2170
        %v2418 = vsel %vm1647, %v2402, %v2172
        %v2419 = vsel %vm1647, %v2403, %v2174
        %v2420 = vsel %vm1647, %v2404, %v2176
        %v2421 = vsel %vm1647, %v2405, %v2178
        %v2422 = vsel %vm1647, %v2406, %v2180
        %v2423 = vsel %vm1647, %v2407, %v2182
        %v2424 = vsel %vm1647, %v2408, %v2184
        %v2425 = vsel %vm1664, %v2409, %v2218
        %v2426 = vsel %vm1664, %v2410, %v2220
        %v2427 = vsel %vm1664, %v2411, %v2222
        %v2428 = vsel %vm1664, %v2412, %v2224
        %v2429 = vsel %vm1664, %v2413, %v2226
        %v2430 = vsel %vm1664, %v2414, %v2228
        %v2431 = vsel %vm1664, %v2415, %v2230
        %v2432 = vsel %vm1664, %v2416, %v2232
        %v2433 = vsel %vm1664, %v2417, %v2234
        %v2434 = vsel %vm1664, %v2418, %v2236
        %v2435 = vsel %vm1664, %v2419, %v2238
        %v2436 = vsel %vm1664, %v2420, %v2240
        %v2437 = vsel %vm1664, %v2421, %v2242
        %v2438 = vsel %vm1664, %v2422, %v2244
        %v2439 = vsel %vm1664, %v2423, %v2246
        %v2440 = vsel %vm1664, %v2424, %v2248
        %v2441 = vsel %vm1681, %v2425, %v2282
        %v2442 = vsel %vm1681, %v2426, %v2284
        %v2443 = vsel %vm1681, %v2427, %v2286
        %v2444 = vsel %vm1681, %v2428, %v2288
        %v2445 = vsel %vm1681, %v2429, %v2290
        %v2446 = vsel %vm1681, %v2430, %v2292
        %v2447 = vsel %vm1681, %v2431, %v2294
        %v2448 = vsel %vm1681, %v2432, %v2296
        %v2449 = vsel %vm1681, %v2433, %v2298
        %v2450 = vsel %vm1681, %v2434, %v2300
        %v2451 = vsel %vm1681, %v2435, %v2302
        %v2452 = vsel %vm1681, %v2436, %v2304
        %v2453 = vsel %vm1681, %v2437, %v2306
        %v2454 = vsel %vm1681, %v2438, %v2308
        %v2455 = vsel %vm1681, %v2439, %v2310
        %v2456 = vsel %vm1681, %v2440, %v2312
        %2473 = vrot.lane.b32.xlu0 %v2441, 64
        %v2474 = vpop.permute.xlu0 %2473
        %2475 = vrot.lane.b32.xlu0 %v2442, 64
        %v2476 = vpop.permute.xlu0 %2475
        %2477 = vrot.lane.b32.xlu0 %v2443, 64
        %v2478 = vpop.permute.xlu0 %2477
        %2479 = vrot.lane.b32.xlu0 %v2444, 64
        %v2480 = vpop.permute.xlu0 %2479
        %2481 = vrot.lane.b32.xlu0 %v2445, 64
        %v2482 = vpop.permute.xlu0 %2481
        %2483 = vrot.lane.b32.xlu0 %v2446, 64
        %v2484 = vpop.permute.xlu0 %2483
        %2485 = vrot.lane.b32.xlu0 %v2447, 64
        %v2486 = vpop.permute.xlu0 %2485
        %2487 = vrot.lane.b32.xlu0 %v2448, 64
        %v2488 = vpop.permute.xlu0 %2487
        %2489 = vrot.lane.b32.xlu0 %v2449, 64
        %v2490 = vpop.permute.xlu0 %2489
        %2491 = vrot.lane.b32.xlu0 %v2450, 64
        %v2492 = vpop.permute.xlu0 %2491
        %2493 = vrot.lane.b32.xlu0 %v2451, 64
        %v2494 = vpop.permute.xlu0 %2493
        %2495 = vrot.lane.b32.xlu0 %v2452, 64
        %v2496 = vpop.permute.xlu0 %2495
        %2497 = vrot.lane.b32.xlu0 %v2453, 64
        %v2498 = vpop.permute.xlu0 %2497
        %2499 = vrot.lane.b32.xlu0 %v2454, 64
        %v2500 = vpop.permute.xlu0 %2499
        %2501 = vrot.lane.b32.xlu0 %v2455, 64
        %v2502 = vpop.permute.xlu0 %2501
        %2503 = vrot.lane.b32.xlu0 %v2456, 64
        %v2504 = vpop.permute.xlu0 %2503
        %vm2521 = vcmask 523264
        %v2522 = vsel %vm2521, %v1801, %v2474
        %v2523 = vsel %vm2521, %v1802, %v2476
        %v2524 = vsel %vm2521, %v1803, %v2478
        %v2525 = vsel %vm2521, %v1804, %v2480
        %v2526 = vsel %vm2521, %v1805, %v2482
        %v2527 = vsel %vm2521, %v1806, %v2484
        %v2528 = vsel %vm2521, %v1807, %v2486
        %v2529 = vsel %vm2521, %v1808, %v2488
        %v2530 = vsel %vm2521, %v1809, %v2490
        %v2531 = vsel %vm2521, %v1810, %v2492
        %v2532 = vsel %vm2521, %v1811, %v2494
        %v2533 = vsel %vm2521, %v1812, %v2496
        %v2534 = vsel %vm2521, %v1813, %v2498
        %v2535 = vsel %vm2521, %v1814, %v2500
        %v2536 = vsel %vm2521, %v1815, %v2502
        %v2537 = vsel %vm2521, %v1816, %v2504
        %v2538 = vld [vmem:[%s1] sm:$0xff]
        %v2539 = vld [vmem:[%s1 + $0x8] sm:$0xff]
        %v2540 = vld [vmem:[%s1 + $0x10] sm:$0xff]
        %v2541 = vld [vmem:[%s1 + $0x18] sm:$0xff]
        %v2542 = vld [vmem:[%s1 + $0x20] sm:$0xff]
        %v2543 = vld [vmem:[%s1 + $0x28] sm:$0xff]
        %v2544 = vld [vmem:[%s1 + $0x30] sm:$0xff]
        %v2545 = vld [vmem:[%s1 + $0x38] sm:$0xff]
        %v2546 = vld [vmem:[%s1 + $0x40] sm:$0xff]
        %v2547 = vld [vmem:[%s1 + $0x48] sm:$0xff]
        %v2548 = vld [vmem:[%s1 + $0x50] sm:$0xff]
        %v2549 = vld [vmem:[%s1 + $0x58] sm:$0xff]
        %v2550 = vld [vmem:[%s1 + $0x60] sm:$0xf]
        %v2551 = vld [vmem:[%s2] sm:$0x1]
        %v2553 = vperm.slane %v2551, 0
        %vm2555 = vcmask 818176
        %v2557 = vsel %vm2555, %v2522, 0
        %v2560 = vsel %vm2555, %v2523, 0
        %v2563 = vsel %vm2555, %v2524, 0
        %v2566 = vsel %vm2555, %v2525, 0
        %v2569 = vsel %vm2555, %v2526, 0
        %v2572 = vsel %vm2555, %v2527, 0
        %v2575 = vsel %vm2555, %v2528, 0
        %v2578 = vsel %vm2555, %v2529, 0
        %v2581 = vsel %vm2555, %v2530, 0
        %v2584 = vsel %vm2555, %v2531, 0
        %v2587 = vsel %vm2555, %v2532, 0
        %v2590 = vsel %vm2555, %v2533, 0
        %v2593 = vsel %vm2555, %v2534, 0
        %v2596 = vsel %vm2555, %v2535, 0
        %v2599 = vsel %vm2555, %v2536, 0
        %v2602 = vsel %vm2555, %v2537, 0
        %vm2604 = vcmask 1043456
        %v2606 = vsel %vm2604, %v2550, 0
        %2608 = vmatpush.msra.mxu0 0.0
        %2609 = vmatpush.msra.mxu0 0.0
        %2610 = vmatpush.msra.mxu0 0.0
        %2611 = vmatpush.msra.mxu0 %v2606
        %2612 = vmatpush.msra.mxu0 %v2549
        %2613 = vmatpush.msra.mxu0 %v2548
        %2614 = vmatpush.msra.mxu0 %v2547
        %2615 = vmatpush.msra.mxu0 %v2546
        %2616 = vmatpush.msra.mxu0 %v2545
        %2617 = vmatpush.msra.mxu0 %v2544
        %2618 = vmatpush.msra.mxu0 %v2543
        %2619 = vmatpush.msra.mxu0 %v2542
        %2620 = vmatpush.msra.mxu0 %v2541
        %2621 = vmatpush.msra.mxu0 %v2540
        %2622 = vmatpush.msra.mxu0 %v2539
        %2623 = vmatpush.msra.mxu0 %v2538
        %2624 = vmatmul.f32.gmra.mxu0 %v2557
        %v2625 = vpop.f32.mrf.mxu0
        %v2626 = vadd.f32 %v2553, %v2625
        %2627 = vmatmul.f32.gmra.mxu0 %v2560
        %v2628 = vpop.f32.mrf.mxu0
        %v2629 = vadd.f32 %v2553, %v2628
        %2630 = vmatmul.f32.gmra.mxu0 %v2563
        %v2631 = vpop.f32.mrf.mxu0
        %v2632 = vadd.f32 %v2553, %v2631
        %2633 = vmatmul.f32.gmra.mxu0 %v2566
        %v2634 = vpop.f32.mrf.mxu0
        %v2635 = vadd.f32 %v2553, %v2634
        %2636 = vmatmul.f32.gmra.mxu0 %v2569
        %v2637 = vpop.f32.mrf.mxu0
        %v2638 = vadd.f32 %v2553, %v2637
        %2639 = vmatmul.f32.gmra.mxu0 %v2572
        %v2640 = vpop.f32.mrf.mxu0
        %v2641 = vadd.f32 %v2553, %v2640
        %2642 = vmatmul.f32.gmra.mxu0 %v2575
        %v2643 = vpop.f32.mrf.mxu0
        %v2644 = vadd.f32 %v2553, %v2643
        %2645 = vmatmul.f32.gmra.mxu0 %v2578
        %v2646 = vpop.f32.mrf.mxu0
        %v2647 = vadd.f32 %v2553, %v2646
        %2648 = vmatmul.f32.gmra.mxu0 %v2581
        %v2649 = vpop.f32.mrf.mxu0
        %v2650 = vadd.f32 %v2553, %v2649
        %2651 = vmatmul.f32.gmra.mxu0 %v2584
        %v2652 = vpop.f32.mrf.mxu0
        %v2653 = vadd.f32 %v2553, %v2652
        %2654 = vmatmul.f32.gmra.mxu0 %v2587
        %v2655 = vpop.f32.mrf.mxu0
        %v2656 = vadd.f32 %v2553, %v2655
        %2657 = vmatmul.f32.gmra.mxu0 %v2590
        %v2658 = vpop.f32.mrf.mxu0
        %v2659 = vadd.f32 %v2553, %v2658
        %2660 = vmatmul.f32.gmra.mxu0 %v2593
        %v2661 = vpop.f32.mrf.mxu0
        %v2662 = vadd.f32 %v2553, %v2661
        %2663 = vmatmul.f32.gmra.mxu0 %v2596
        %v2664 = vpop.f32.mrf.mxu0
        %v2665 = vadd.f32 %v2553, %v2664
        %2666 = vmatmul.f32.gmra.mxu0 %v2599
        %v2667 = vpop.f32.mrf.mxu0
        %v2668 = vadd.f32 %v2553, %v2667
        %2669 = vmatmul.f32.gmra.mxu0 %v2602
        %v2670 = vpop.f32.mrf.mxu0
        %v2671 = vadd.f32 %v2553, %v2670
        %2672 = vdwg.mxu0
        %v2673 = vmax.f32 %v2626, 0.0
        %v2674 = vmax.f32 %v2629, 0.0
        %v2675 = vmax.f32 %v2632, 0.0
        %v2676 = vmax.f32 %v2635, 0.0
        %v2677 = vmax.f32 %v2638, 0.0
        %v2678 = vmax.f32 %v2641, 0.0
        %v2679 = vmax.f32 %v2644, 0.0
        %v2680 = vmax.f32 %v2647, 0.0
        %v2681 = vmax.f32 %v2650, 0.0
        %v2682 = vmax.f32 %v2653, 0.0
        %v2683 = vmax.f32 %v2656, 0.0
        %v2684 = vmax.f32 %v2659, 0.0
        %v2685 = vmax.f32 %v2662, 0.0
        %v2686 = vmax.f32 %v2665, 0.0
        %v2687 = vmax.f32 %v2668, 0.0
        %v2688 = vmax.f32 %v2671, 0.0
        %2689 = vst [vmem:[%s187] sm:$0xff] %v2673
        %2690 = vst [vmem:[%s187 + $0x8] sm:$0xff] %v2674
        %2691 = vst [vmem:[%s187 + $0x10] sm:$0xff] %v2675
        %2692 = vst [vmem:[%s187 + $0x18] sm:$0xff] %v2676
        %2693 = vst [vmem:[%s187 + $0x20] sm:$0xff] %v2677
        %2694 = vst [vmem:[%s187 + $0x28] sm:$0xff] %v2678
        %2695 = vst [vmem:[%s187 + $0x30] sm:$0xff] %v2679
        %2696 = vst [vmem:[%s187 + $0x38] sm:$0xff] %v2680
        %2697 = vst [vmem:[%s187 + $0x40] sm:$0xff] %v2681
        %2698 = vst [vmem:[%s187 + $0x48] sm:$0xff] %v2682
        %2699 = vst [vmem:[%s187 + $0x50] sm:$0xff] %v2683
        %2700 = vst [vmem:[%s187 + $0x58] sm:$0xff] %v2684
        %2701 = vst [vmem:[%s187 + $0x60] sm:$0xff] %v2685
        %2702 = vst [vmem:[%s187 + $0x68] sm:$0xff] %v2686
        %2703 = vst [vmem:[%s187 + $0x70] sm:$0xff] %v2687
        %2704 = vst [vmem:[%s187 + $0x78] sm:$0xff] %v2688
        %s2705 = sand.u32 %s109, 1
        %s2706 = scalar_lea.sflag [#allocation3], %s2705
        %s2707 = sand.u32 %s109, 1
        %s2708 = smul.addr %s2707, 128
        %s2709 = scalar_lea.vmem [#allocation2], %s2708
        // Predicated region
        $region33: #{tpu_custom_call.1} parent=31 // pred_check
          %p2710 = pneg %p119
        $region34: #{tpu_custom_call.1} parent=31 // pred_check_branch
          %2712 = sbr.rel (%p2710) target = $region36
        $region35: #{tpu_custom_call.1} parent=31 // pred_region
          %s2713 = smul.u32 16, %s22
          %2715 = vsyncadd %s2706, 0
          %s2716 = smul.addr %s21, 32
          %s2717 = sadd.s32 %s2713, %s2716
          %s2718 = smul.addr %s2717, 8
          %s2719 = scalar_lea.hbm %s3, %s2718
          %s2720 = sshll.u32 %s2709, 4
          %s2721 = int_to_ptr.vmem [resolvable:$true] %s2720
          %s2722 = sshll.u32 %s2719, 4
          %s2723 = int_to_ptr.hbm [resolvable:$true] %s2722
          %2728 = dma.vmem_to_hbm [thread:$0]  %s2721, 2048, %s2723, %s2706, 128, 128, 8
        $region36: #{tpu_custom_call.1} parent=31 // pred_fallthru
          _
      $region32: #{tpu_custom_call.1} parent=5 // pred_fallthru
        _
      %p2729 = scmp.le.s32.totalorder 2, %s12
      // Predicated region
      $region37: #{tpu_custom_call.1} parent=5 // pred_check
        %p2730 = pneg %p2729
      $region38: #{tpu_custom_call.1} parent=5 // pred_check_branch
        %2732 = sbr.rel (%p2730) target = $region40
      $region39: #{tpu_custom_call.1} parent=5 // pred_region
        %s2733 = ssub.s32 %s12, 2
        // Predicated region
        $region41: #{tpu_custom_call.1} parent=39 // pred_check
          %p2734 = pneg %p125
        $region42: #{tpu_custom_call.1} parent=39 // pred_check_branch
          %2736 = sbr.rel (%p2734) target = $region44
        $region43: #{tpu_custom_call.1} parent=39 // pred_region
          %s2737 = sand.u32 %s110, 1
          %s2738 = scalar_lea.sflag [#allocation3], %s2737
          %s2739 = sand.u32 %s110, 1
          %s2740 = smul.addr %s2739, 128
          %s2741 = scalar_lea.vmem [#allocation2], %s2740
          %2743 = dma.done %s2738, 2048
        $region44: #{tpu_custom_call.1} parent=39 // pred_fallthru
          _
      $region40: #{tpu_custom_call.1} parent=5 // pred_fallthru
        _
    $region6: #{tpu_custom_call.1} parent=1 // loop_footer
      %s16 = sadd.s32 1, %s12
    $region7: #{tpu_custom_call.1} parent=1 // loop_footer_branch
      %11 = sbr.rel target = $region3
    $region8: #{tpu_custom_call.1} parent=1 // loop_exit
      _
    %2744 = vsyncpa [#allocation3], 1
    %s2745 = scalar_lea.sflag [#allocation3], 1
    %2746 = vsyncpa %s2745, 1

</llo_original>
